<compile_context>
chip_gen: v6e
topology: v6e:2x2x1
jax: 0.10.0
libtpu: 0.0.40
codegen_flags: <defaults>
</compile_context>

<pallas_src>
import functools

import jax
import jax.numpy as jnp
import numpy as np
from jax import lax
from jax.experimental import pallas as pl
from jax.experimental.pallas import tpu as pltpu


# ---------------------------------------------------------------------------
# In-kernel helpers: +-1 row (H-direction) neighbours, kept in registers.
# The W direction and its zero padding live in the packed weights.
# ---------------------------------------------------------------------------
def _rows_above(v, mask_first):
    """out[r] = v[r-1] within the same image; 0 on the first row of an image."""
    z = jnp.zeros((1, v.shape[1]), v.dtype)
    return jnp.concatenate([z, v[:-1, :]], axis=0) * mask_first


def _rows_below(v, mask_last):
    """out[r] = v[r+1] within the same image; 0 on the last row of an image."""
    z = jnp.zeros((1, v.shape[1]), v.dtype)
    return jnp.concatenate([v[1:, :], z], axis=0) * mask_last


# ---------------------------------------------------------------------------
# Fused kernel.  Grid = (phase, row_tile):
#   phase 0: run both convs, accumulate BN column sums / sums of squares
#   phase 1: recompute convs, apply BN, write [leaky(x) | up-path] in one store
# ---------------------------------------------------------------------------
def _fused_kernel(masks_ref, xs_ref, wd_ref, wu_ref, pool_ref, poolt_ref,
                  gamma_ref, beta_ref, out_ref,
                  csum_sc, csq_sc, scale_sc, shift_sc,
                  *, inv_count, eps, dot_dtype):
    ph = pl.program_id(0)          # 0: stats pass, 1: normalize + write pass
    t = pl.program_id(1)           # row-tile index
    cd = dot_dtype

    mask_first = masks_ref[:, 0:1]          # (TR, 1): 0 on first row of an image
    mask_last = masks_ref[:, 1:2]           # (TR, 1): 0 on last  row of an image

    # ---- LeakyReLU(0.2); inplace=True in PyTorch => skip branch is activated.
    xs = xs_ref[...]                                        # (TR, Wo*4*Cin)
    xa = jnp.where(xs > 0, xs, 0.2 * xs)

    # ---- down: Conv2d(Cin->inner, k4, s2, p1, bias=False) as 3 H-tap matmuls
    #      against block-Toeplitz weights (W taps + W padding inside weights).
    h = jnp.dot(xa.astype(cd), wd_ref[1], preferred_element_type=jnp.float32)
    h = h + jnp.dot(_rows_above(xa, mask_first).astype(cd), wd_ref[0],
                    preferred_element_type=jnp.float32)
    h = h + jnp.dot(_rows_below(xa, mask_last).astype(cd), wd_ref[2],
                    preferred_element_type=jnp.float32)
    h = jnp.maximum(h, 0.0)                                 # uprelu (ReLU)

    # ---- up: ConvTranspose2d(inner->outer, k4, s2, p1, bias=False), 2x2 phase
    #      decomposition, again 3 H-tap matmuls.
    y = jnp.dot(h.astype(cd), wu_ref[1], preferred_element_type=jnp.float32)
    y = y + jnp.dot(_rows_above(h, mask_first).astype(cd), wu_ref[0],
                    preferred_element_type=jnp.float32)
    y = y + jnp.dot(_rows_below(h, mask_last).astype(cd), wu_ref[2],
                    preferred_element_type=jnp.float32)     # (TR, Wo*4*outer) f32

    # ---- BatchNorm2d batch statistics: single pass (sum & sum of squares).
    @pl.when(jnp.logical_and(ph == 0, t == 0))
    def _():
        csum_sc[...] = jnp.zeros_like(csum_sc)
        csq_sc[...] = jnp.zeros_like(csq_sc)

    @pl.when(ph == 0)
    def _():
        csum_sc[...] += jnp.sum(y, axis=0, keepdims=True)
        csq_sc[...] += jnp.sum(y * y, axis=0, keepdims=True)
        # No output store in the stats pass: the block written back here is
        # overwritten by the phase-1 store of the same HBM region.

    # ---- Finalize per-channel scale/shift once, broadcast back to the lane
    #      layout via the 0/1 pooling matrices (batch stats, biased variance).
    @pl.when(jnp.logical_and(ph == 1, t == 0))
    def _():
        mean = jnp.dot(csum_sc[...], pool_ref[...],
                       preferred_element_type=jnp.float32) * inv_count
        ey2 = jnp.dot(csq_sc[...], pool_ref[...],
                      preferred_element_type=jnp.float32) * inv_count
        var = ey2 - mean * mean
        scale = gamma_ref[...] * lax.rsqrt(var + eps)
        shift = beta_ref[...] - mean * scale
        scale_sc[...] = jnp.dot(scale, poolt_ref[...],
                                preferred_element_type=jnp.float32)
        shift_sc[...] = jnp.dot(shift, poolt_ref[...],
                                preferred_element_type=jnp.float32)

    @pl.when(ph == 1)
    def _():
        y_bn = y * scale_sc[...] + shift_sc[...]
        # concat([leaky(x), up-path]) assembled in registers -> ONE wide store.
        out_ref[...] = jnp.concatenate([xa, y_bn], axis=-1)


# ---------------------------------------------------------------------------
# One-time host-side packing: conv weights -> block-Toeplitz matmul matrices
# (W direction + its zero padding folded in), plus BN channel-pooling matrices.
# NOTE: the packed weights depend on Wo (the block-Toeplitz width).
# ---------------------------------------------------------------------------
def pack_params(w_down, w_up_t, Wo, dot_dtype=jnp.float32):
    wd = np.asarray(w_down, np.float32)        # (inner, Cin, 4, 4)   Conv2d
    wu = np.asarray(w_up_t, np.float32)        # (inner, outer, 4, 4) ConvTranspose2d
    inner, cin = wd.shape[0], wd.shape[1]
    outer = wu.shape[1]
    Lx, Lh, Ly = Wo * 4 * cin, Wo * inner, Wo * 4 * outer

    # Down conv: kernel tap (kh,kw) <-> block shift (bh,bw) + phase (ph,pw),
    #   kh = 2*bh + ph - 1, kw = 2*bw + pw - 1.
    wd3 = np.zeros((3, Lx, Lh), np.float32)
    for bh in range(3):
        for p_h in range(2):
            kh = 2 * bh + p_h - 1
            if not 0 <= kh < 4:
                continue
            for bw in range(3):
                for p_w in range(2):
                    kw = 2 * bw + p_w - 1
                    if not 0 <= kw < 4:
                        continue
                    blk = wd[:, :, kh, kw].T                    # (cin, inner)
                    for ow in range(Wo):
                        jc = ow + bw - 1                        # input column
                        if 0 <= jc < Wo:
                            r0 = jc * 4 * cin + (p_h * 2 + p_w) * cin
                            wd3[bh, r0:r0 + cin,
                                ow * inner:(ow + 1) * inner] = blk

    # Transposed conv: output phase (ph,pw), input offset (dh,dw) <-> tap
    #   kh = ph + 1 - 2*dh, kw = pw + 1 - 2*dw.
    wu3 = np.zeros((3, Lh, Ly), np.float32)
    for di, dh in enumerate((-1, 0, 1)):
        for p_h in range(2):
            kh = p_h + 1 - 2 * dh
            if not 0 <= kh < 4:
                continue
            for dw in (-1, 0, 1):
                for p_w in range(2):
                    kw = p_w + 1 - 2 * dw
                    if not 0 <= kw < 4:
                        continue
                    blk = wu[:, :, kh, kw]                      # (inner, outer)
                    for j in range(Wo):                         # output column
                        jc = j + dw                             # input column
                        if 0 <= jc < Wo:
                            c0 = j * 4 * outer + (p_h * 2 + p_w) * outer
                            wu3[di, jc * inner:(jc + 1) * inner,
                                c0:c0 + outer] = blk

    # BN channel pooling: lane l of the up-path layout -> channel l % outer.
    pool = (np.arange(Ly)[:, None] % outer
            == np.arange(outer)[None, :]).astype(np.float32)   # (Ly, outer)
    return (jnp.asarray(wd3, dot_dtype), jnp.asarray(wu3, dot_dtype),
            jnp.asarray(pool), jnp.asarray(pool.T.copy()))


# ---------------------------------------------------------------------------
# Forward (NCHW in / NCHW out, exactly like the PyTorch module).
# ---------------------------------------------------------------------------
def unet_innermost_forward(x_nchw, wd3, wu3, pool, poolt, gamma, beta,
                           *, row_tile=None, eps=1e-5, interpret=False):
    N, Cin, H, W = x_nchw.shape
    Ho, Wo = H // 2, W // 2
    Lx = Wo * 4 * Cin
    Lh = wd3.shape[2]
    Ly = wu3.shape[2]
    outer = Ly // (4 * Wo)
    n_rows = N * Ho

    # NCHW -> lane-dense space-to-depth rows: row=(n,i), lane=(j, ph, pw, c).
    xs = (x_nchw.reshape(N, Cin, Ho, 2, Wo, 2)
          .transpose(0, 2, 4, 3, 5, 1)
          .reshape(n_rows, Lx))

    # Row tile = whole images (so the +-1 row halo is exactly what the image
    # zero-padding zeros anyway -> no cross-tile halo).  Pick the biggest tile
    # that fits a modest per-tile activation budget.
    if row_tile is None:
        budget = 2 * 1024 * 1024
        row_tile = Ho
        for k in range(1, N + 1):
            tr = k * Ho
            if n_rows % tr:
                continue
            if tr != n_rows and tr % 8:
                continue
            if 4 * tr * (2 * Lx + Ly) <= budget:
                row_tile = tr
    assert n_rows % row_tile == 0 and row_tile % Ho == 0
    n_tiles = n_rows // row_tile

    # Per-tile image-boundary masks for the +-1 row shifts (tiles are aligned
    # to image boundaries, so the masks are identical for every tile).
    ii = jnp.arange(row_tile) % Ho
    masks = jnp.stack([(ii != 0).astype(jnp.float32),
                       (ii != Ho - 1).astype(jnp.float32)], axis=1)  # (TR, 2)

    inv_count = 1.0 / float(n_rows * Wo * 4)            # = 1 / (N*H*W)

    kernel = functools.partial(_fused_kernel, inv_count=inv_count, eps=eps,
                               dot_dtype=wd3.dtype)

    # VMEM budget derived from actual tile sizes; never below the 32 MiB scoped
    # default, capped at the 64 MiB physical VMEM of a v7x TensorCore.
    itm = 4
    est = itm * (2 * row_tile * Lx + 2 * row_tile * (Lx + Ly)
                 + 2 * 3 * Lx * Lh + 2 * 3 * Lh * Ly
                 + 4 * Ly * outer + 4 * Ly + 4 * row_tile + 8 * outer)
    vmem_limit = int(min(64 * 1024 * 1024, max(32 * 1024 * 1024, 2 * est)))

    out = pl.pallas_call(
        kernel,
        out_shape=jax.ShapeDtypeStruct((n_rows, Lx + Ly), jnp.float32),
        grid=(2, n_tiles),                  # (phase: stats / normalize, row tile)
        in_specs=[
            pl.BlockSpec((row_tile, 2), lambda p, t: (0, 0)),        # masks
            pl.BlockSpec((row_tile, Lx), lambda p, t: (t, 0)),       # xs
            pl.BlockSpec((3, Lx, Lh), lambda p, t: (0, 0, 0)),       # down weights
            pl.BlockSpec((3, Lh, Ly), lambda p, t: (0, 0, 0)),       # up weights
            pl.BlockSpec((Ly, outer), lambda p, t: (0, 0)),          # pool
            pl.BlockSpec((outer, Ly), lambda p, t: (0, 0)),          # pool^T
            pl.BlockSpec((1, outer), lambda p, t: (0, 0)),           # gamma
            pl.BlockSpec((1, outer), lambda p, t: (0, 0)),           # beta
        ],
        out_specs=pl.BlockSpec((row_tile, Lx + Ly), lambda p, t: (t, 0)),
        scratch_shapes=[
            pltpu.VMEM((1, Ly), jnp.float32),   # BN column sums
            pltpu.VMEM((1, Ly), jnp.float32),   # BN column sums of squares
            pltpu.VMEM((1, Ly), jnp.float32),   # BN scale broadcast to lanes
            pltpu.VMEM((1, Ly), jnp.float32),   # BN shift broadcast to lanes
        ],
        compiler_params=pltpu.CompilerParams(
            # Both axes sequential: phase 1 consumes phase-0 stats; the tile
            # axis accumulates into a single shared scratch accumulator.
            dimension_semantics=("arbitrary", "arbitrary"),
            vmem_limit_bytes=vmem_limit,
        ),
        interpret=interpret,
    )(masks, xs, wd3, wu3, pool, poolt,
      gamma.reshape(1, outer).astype(jnp.float32),
      beta.reshape(1, outer).astype(jnp.float32))

    # lane-dense s2d rows -> NCHW for both concat halves (layout plumbing only;
    # the channel concat itself already happened inside the kernel store).
    def s2d_rows_to_nchw(rows, c):
        r = rows.reshape(N, Ho, Wo, 2, 2, c)
        return r.transpose(0, 5, 1, 3, 2, 4).reshape(N, c, H, W)

    skip = s2d_rows_to_nchw(out[:, :Lx], Cin)
    up = s2d_rows_to_nchw(out[:, Lx:], outer)
    return jnp.concatenate([skip, up], axis=1)


# ---------------------------------------------------------------------------
# Pure-JAX reference (silent correctness check).
# ---------------------------------------------------------------------------
def _ref_forward(x_nchw, w_down, w_up_t, gamma, beta):
    xa = jnp.where(x_nchw > 0, x_nchw, 0.2 * x_nchw)
    h = lax.conv_general_dilated(xa, w_down, (2, 2), ((1, 1), (1, 1)),
                                 dimension_numbers=('NCHW', 'OIHW', 'NCHW'))
    h = jnp.maximum(h, 0.0)
    w_eq = jnp.transpose(jnp.flip(w_up_t, axis=(2, 3)), (1, 0, 2, 3))
    y = lax.conv_general_dilated(h, w_eq, (1, 1), ((2, 2), (2, 2)),
                                 lhs_dilation=(2, 2),
                                 dimension_numbers=('NCHW', 'OIHW', 'NCHW'))
    mean = jnp.mean(y, axis=(0, 2, 3), keepdims=True)
    var = jnp.mean((y - mean) ** 2, axis=(0, 2, 3), keepdims=True)
    y = (y - mean) * lax.rsqrt(var + 1e-5)
    y = y * gamma.reshape(1, -1, 1, 1) + beta.reshape(1, -1, 1, 1)
    return jnp.concatenate([xa, y], axis=1)


# ---------------------------------------------------------------------------
if __name__ == "__main__":
    # Small shapes: batch=2, outer_nc=input_nc=4, inner_nc=8, spatial=16
    N, outer_nc, inner_nc, H, W = 2, 4, 8, 16, 16

    key = jax.random.PRNGKey(0)
    kx, kd, ku = jax.random.split(key, 3)

    x = jax.random.normal(kx, (N, outer_nc, H, W), dtype=jnp.float32)
    # Conv2d weight: (inner_nc, input_nc, 4, 4), bias=False (BatchNorm norm layer)
    w_down = jax.random.normal(kd, (inner_nc, outer_nc, 4, 4), jnp.float32) * 0.1
    # ConvTranspose2d weight: (inner_nc, outer_nc, 4, 4), bias=False
    w_up_t = jax.random.normal(ku, (inner_nc, outer_nc, 4, 4), jnp.float32) * 0.1
    # BatchNorm2d(outer_nc) affine params (PyTorch default init)
    gamma = jnp.ones((outer_nc,), jnp.float32)
    beta = jnp.zeros((outer_nc,), jnp.float32)

    # One-time host-side packing (f32 dots keep the 1e-4 check; use
    # dot_dtype=jnp.bfloat16 for ~2x MXU throughput on v6e/v7x).
    wd3, wu3, pool, poolt = pack_params(w_down, w_up_t, W // 2,
                                        dot_dtype=jnp.float32)

    # row_tile=8 -> 2 row tiles x 2 phases: exercises the tiled BN accumulation.
    fwd = jax.jit(functools.partial(unet_innermost_forward, row_tile=8))
    out = jax.block_until_ready(fwd(x, wd3, wu3, pool, poolt, gamma, beta))

    ref = _ref_forward(x, w_down, w_up_t, gamma, beta)
    assert out.shape == (N, 2 * outer_nc, H, W), out.shape
    max_err = float(jnp.abs(out - ref).max())
    assert jnp.allclose(out, ref, rtol=1e-4, atol=1e-4), max_err

    print("KERNEL_OK")
</pallas_src>

<mosaic_0001>
module attributes {stable_mosaic.version = 11 : i64} {
  func.func @_fused_kernel(%arg0: i32, %arg1: i32, %arg2: memref<8x2xf32, #tpu.memory_space<vmem>>, %arg3: memref<8x128xf32, #tpu.memory_space<vmem>>, %arg4: memref<3x128x64xf32, #tpu.memory_space<vmem>>, %arg5: memref<3x64x128xf32, #tpu.memory_space<vmem>>, %arg6: memref<128x4xf32, #tpu.memory_space<vmem>>, %arg7: memref<4x128xf32, #tpu.memory_space<vmem>>, %arg8: memref<1x4xf32, #tpu.memory_space<vmem>>, %arg9: memref<1x4xf32, #tpu.memory_space<vmem>>, %arg10: memref<8x256xf32, #tpu.memory_space<vmem>>, %arg11: memref<1x128xf32, #tpu.memory_space<vmem>>, %arg12: memref<1x128xf32, #tpu.memory_space<vmem>>, %arg13: memref<1x128xf32, #tpu.memory_space<vmem>>, %arg14: memref<1x128xf32, #tpu.memory_space<vmem>>) attributes {dimension_semantics = [#tpu.dimension_semantics<arbitrary>, #tpu.dimension_semantics<arbitrary>], iteration_bounds = array<i64: 2, 2>, scalar_prefetch = 0 : i64, scratch_operands = 4 : i64, tpu.core_type = #tpu.core_type<tc>, window_params = [{pipeline_mode = #tpu.pipeline_mode<synchronous>, transform_indices = @transform_0, window_bounds = array<i64: 8, 2>}, {transform_indices = @transform_1, window_bounds = array<i64: 8, 128>}, {pipeline_mode = #tpu.pipeline_mode<synchronous>, transform_indices = @transform_2, window_bounds = array<i64: 3, 128, 64>}, {pipeline_mode = #tpu.pipeline_mode<synchronous>, transform_indices = @transform_3, window_bounds = array<i64: 3, 64, 128>}, {pipeline_mode = #tpu.pipeline_mode<synchronous>, transform_indices = @transform_4, window_bounds = array<i64: 128, 4>}, {pipeline_mode = #tpu.pipeline_mode<synchronous>, transform_indices = @transform_5, window_bounds = array<i64: 4, 128>}, {pipeline_mode = #tpu.pipeline_mode<synchronous>, transform_indices = @transform_6, window_bounds = array<i64: 1, 4>}, {pipeline_mode = #tpu.pipeline_mode<synchronous>, transform_indices = @transform_7, window_bounds = array<i64: 1, 4>}, {transform_indices = @transform_8, window_bounds = array<i64: 8, 256>}]} {
    %c0 = arith.constant 0 : index
    %c0_0 = arith.constant 0 : index
    %0 = vector.load %arg2[%c0, %c0_0] : memref<8x2xf32, #tpu.memory_space<vmem>>, vector<8x1xf32>
    %c0_1 = arith.constant 0 : index
    %c1 = arith.constant 1 : index
    %1 = vector.load %arg2[%c0_1, %c1] : memref<8x2xf32, #tpu.memory_space<vmem>>, vector<8x1xf32>
    %c0_2 = arith.constant 0 : index
    %c0_3 = arith.constant 0 : index
    %2 = vector.load %arg3[%c0_2, %c0_3] : memref<8x128xf32, #tpu.memory_space<vmem>>, vector<8x128xf32>
    %cst = arith.constant 0.000000e+00 : f32
    %3 = vector.broadcast %cst : f32 to vector<8x128xf32>
    %4 = arith.cmpf ogt, %2, %3 : vector<8x128xf32>
    %cst_4 = arith.constant 2.000000e-01 : f32
    %5 = vector.broadcast %cst_4 : f32 to vector<8x128xf32>
    %6 = arith.mulf %5, %2 : vector<8x128xf32>
    %7 = arith.select %4, %2, %6 : vector<8x128xi1>, vector<8x128xf32>
    %c1_5 = arith.constant 1 : index
    %c0_6 = arith.constant 0 : index
    %c0_7 = arith.constant 0 : index
    %8 = vector.load %arg4[%c1_5, %c0_6, %c0_7] : memref<3x128x64xf32, #tpu.memory_space<vmem>>, vector<1x128x64xf32>
    %9 = vector.shape_cast %8 : vector<1x128x64xf32> to vector<128x64xf32>
    %cst_8 = arith.constant dense<0.000000e+00> : vector<8x64xf32>
    %10 = tpu.matmul %7, %9, %cst_8 {dimension_numbers = #tpu.dot_dimension_numbers<[1], [0], [0], [1], [0, 0, 1, 1], [], []>} : vector<8x128xf32>, vector<128x64xf32>, vector<8x64xf32> -> vector<8x64xf32>
    %cst_9 = arith.constant 0.000000e+00 : f32
    %11 = vector.broadcast %cst_9 : f32 to vector<1x128xf32>
    %12 = vector.extract_strided_slice %7 {offsets = [0, 0], sizes = [7, 128], strides = [1, 1]} : vector<8x128xf32> to vector<7x128xf32>
    %13 = tpu.concatenate %11, %12 in 0 : vector<1x128xf32>, vector<7x128xf32> -> vector<8x128xf32>
    %14 = vector.broadcast %0 : vector<8x1xf32> to vector<8x128xf32>
    %15 = arith.mulf %13, %14 : vector<8x128xf32>
    %c0_10 = arith.constant 0 : index
    %c0_11 = arith.constant 0 : index
    %c0_12 = arith.constant 0 : index
    %16 = vector.load %arg4[%c0_10, %c0_11, %c0_12] : memref<3x128x64xf32, #tpu.memory_space<vmem>>, vector<1x128x64xf32>
    %17 = vector.shape_cast %16 : vector<1x128x64xf32> to vector<128x64xf32>
    %cst_13 = arith.constant dense<0.000000e+00> : vector<8x64xf32>
    %18 = tpu.matmul %15, %17, %cst_13 {dimension_numbers = #tpu.dot_dimension_numbers<[1], [0], [0], [1], [0, 0, 1, 1], [], []>} : vector<8x128xf32>, vector<128x64xf32>, vector<8x64xf32> -> vector<8x64xf32>
    %19 = arith.addf %10, %18 : vector<8x64xf32>
    %cst_14 = arith.constant 0.000000e+00 : f32
    %20 = vector.broadcast %cst_14 : f32 to vector<1x128xf32>
    %21 = vector.extract_strided_slice %7 {offsets = [1, 0], sizes = [7, 128], strides = [1, 1]} : vector<8x128xf32> to vector<7x128xf32>
    %22 = tpu.concatenate %21, %20 in 0 : vector<7x128xf32>, vector<1x128xf32> -> vector<8x128xf32>
    %23 = vector.broadcast %1 : vector<8x1xf32> to vector<8x128xf32>
    %24 = arith.mulf %22, %23 : vector<8x128xf32>
    %c2 = arith.constant 2 : index
    %c0_15 = arith.constant 0 : index
    %c0_16 = arith.constant 0 : index
    %25 = vector.load %arg4[%c2, %c0_15, %c0_16] : memref<3x128x64xf32, #tpu.memory_space<vmem>>, vector<1x128x64xf32>
    %26 = vector.shape_cast %25 : vector<1x128x64xf32> to vector<128x64xf32>
    %cst_17 = arith.constant dense<0.000000e+00> : vector<8x64xf32>
    %27 = tpu.matmul %24, %26, %cst_17 {dimension_numbers = #tpu.dot_dimension_numbers<[1], [0], [0], [1], [0, 0, 1, 1], [], []>} : vector<8x128xf32>, vector<128x64xf32>, vector<8x64xf32> -> vector<8x64xf32>
    %28 = arith.addf %19, %27 : vector<8x64xf32>
    %cst_18 = arith.constant 0.000000e+00 : f32
    %29 = vector.broadcast %cst_18 : f32 to vector<8x64xf32>
    %30 = arith.maximumf %28, %29 : vector<8x64xf32>
    %c1_19 = arith.constant 1 : index
    %c0_20 = arith.constant 0 : index
    %c0_21 = arith.constant 0 : index
    %31 = vector.load %arg5[%c1_19, %c0_20, %c0_21] : memref<3x64x128xf32, #tpu.memory_space<vmem>>, vector<1x64x128xf32>
    %32 = vector.shape_cast %31 : vector<1x64x128xf32> to vector<64x128xf32>
    %cst_22 = arith.constant dense<0.000000e+00> : vector<8x128xf32>
    %33 = tpu.matmul %30, %32, %cst_22 {dimension_numbers = #tpu.dot_dimension_numbers<[1], [0], [0], [1], [0, 0, 1, 1], [], []>} : vector<8x64xf32>, vector<64x128xf32>, vector<8x128xf32> -> vector<8x128xf32>
    %cst_23 = arith.constant 0.000000e+00 : f32
    %34 = vector.broadcast %cst_23 : f32 to vector<1x64xf32>
    %35 = vector.extract_strided_slice %30 {offsets = [0, 0], sizes = [7, 64], strides = [1, 1]} : vector<8x64xf32> to vector<7x64xf32>
    %36 = tpu.concatenate %34, %35 in 0 : vector<1x64xf32>, vector<7x64xf32> -> vector<8x64xf32>
    %37 = vector.broadcast %0 : vector<8x1xf32> to vector<8x64xf32>
    %38 = arith.mulf %36, %37 : vector<8x64xf32>
    %c0_24 = arith.constant 0 : index
    %c0_25 = arith.constant 0 : index
    %c0_26 = arith.constant 0 : index
    %39 = vector.load %arg5[%c0_24, %c0_25, %c0_26] : memref<3x64x128xf32, #tpu.memory_space<vmem>>, vector<1x64x128xf32>
    %40 = vector.shape_cast %39 : vector<1x64x128xf32> to vector<64x128xf32>
    %cst_27 = arith.constant dense<0.000000e+00> : vector<8x128xf32>
    %41 = tpu.matmul %38, %40, %cst_27 {dimension_numbers = #tpu.dot_dimension_numbers<[1], [0], [0], [1], [0, 0, 1, 1], [], []>} : vector<8x64xf32>, vector<64x128xf32>, vector<8x128xf32> -> vector<8x128xf32>
    %42 = arith.addf %33, %41 : vector<8x128xf32>
    %cst_28 = arith.constant 0.000000e+00 : f32
    %43 = vector.broadcast %cst_28 : f32 to vector<1x64xf32>
    %44 = vector.extract_strided_slice %30 {offsets = [1, 0], sizes = [7, 64], strides = [1, 1]} : vector<8x64xf32> to vector<7x64xf32>
    %45 = tpu.concatenate %44, %43 in 0 : vector<7x64xf32>, vector<1x64xf32> -> vector<8x64xf32>
    %46 = vector.broadcast %1 : vector<8x1xf32> to vector<8x64xf32>
    %47 = arith.mulf %45, %46 : vector<8x64xf32>
    %c2_29 = arith.constant 2 : index
    %c0_30 = arith.constant 0 : index
    %c0_31 = arith.constant 0 : index
    %48 = vector.load %arg5[%c2_29, %c0_30, %c0_31] : memref<3x64x128xf32, #tpu.memory_space<vmem>>, vector<1x64x128xf32>
    %49 = vector.shape_cast %48 : vector<1x64x128xf32> to vector<64x128xf32>
    %cst_32 = arith.constant dense<0.000000e+00> : vector<8x128xf32>
    %50 = tpu.matmul %47, %49, %cst_32 {dimension_numbers = #tpu.dot_dimension_numbers<[1], [0], [0], [1], [0, 0, 1, 1], [], []>} : vector<8x64xf32>, vector<64x128xf32>, vector<8x128xf32> -> vector<8x128xf32>
    %51 = arith.addf %42, %50 : vector<8x128xf32>
    %c0_i32 = arith.constant 0 : i32
    %52 = arith.cmpi eq, %arg0, %c0_i32 : i32
    %c0_i32_33 = arith.constant 0 : i32
    %53 = arith.cmpi eq, %arg1, %c0_i32_33 : i32
    %54 = arith.andi %52, %53 : i1
    %55 = arith.extui %54 : i1 to i32
    %c0_i32_34 = arith.constant 0 : i32
    %56 = arith.cmpi ne, %55, %c0_i32_34 : i32
    scf.if %56 {
      %cst_41 = arith.constant 0.000000e+00 : f32
      %68 = vector.broadcast %cst_41 : f32 to vector<1x128xf32>
      %c0_42 = arith.constant 0 : index
      %c0_43 = arith.constant 0 : index
      %69 = vector.load %arg11[%c0_42, %c0_43] : memref<1x128xf32, #tpu.memory_space<vmem>>, vector<1x128xf32>
      tpu.vector_store %arg11[%c0_42, %c0_43], %68 {strides = array<i32>} : memref<1x128xf32, #tpu.memory_space<vmem>>, vector<1x128xf32>,
      %cst_44 = arith.constant 0.000000e+00 : f32
      %70 = vector.broadcast %cst_44 : f32 to vector<1x128xf32>
      %c0_45 = arith.constant 0 : index
      %c0_46 = arith.constant 0 : index
      %71 = vector.load %arg12[%c0_45, %c0_46] : memref<1x128xf32, #tpu.memory_space<vmem>>, vector<1x128xf32>
      tpu.vector_store %arg12[%c0_45, %c0_46], %70 {strides = array<i32>} : memref<1x128xf32, #tpu.memory_space<vmem>>, vector<1x128xf32>,
    } else {
    }
    %c0_i32_35 = arith.constant 0 : i32
    %57 = arith.cmpi eq, %arg0, %c0_i32_35 : i32
    %58 = arith.extui %57 : i1 to i32
    %c0_i32_36 = arith.constant 0 : i32
    %59 = arith.cmpi ne, %58, %c0_i32_36 : i32
    scf.if %59 {
      %c0_41 = arith.constant 0 : index
      %c0_42 = arith.constant 0 : index
      %68 = vector.load %arg11[%c0_41, %c0_42] : memref<1x128xf32, #tpu.memory_space<vmem>>, vector<1x128xf32>
      %cst_43 = arith.constant dense<0.000000e+00> : vector<128xf32>
      %69 = vector.multi_reduction <add>, %51, %cst_43 [0] : vector<8x128xf32> to vector<128xf32>
      %70 = vector.shape_cast %69 : vector<128xf32> to vector<1x128xf32>
      %71 = arith.addf %68, %70 : vector<1x128xf32>
      %c0_44 = arith.constant 0 : index
      %c0_45 = arith.constant 0 : index
      %72 = vector.load %arg11[%c0_44, %c0_45] : memref<1x128xf32, #tpu.memory_space<vmem>>, vector<1x128xf32>
      tpu.vector_store %arg11[%c0_44, %c0_45], %71 {strides = array<i32>} : memref<1x128xf32, #tpu.memory_space<vmem>>, vector<1x128xf32>,
      %c0_46 = arith.constant 0 : index
      %c0_47 = arith.constant 0 : index
      %73 = vector.load %arg12[%c0_46, %c0_47] : memref<1x128xf32, #tpu.memory_space<vmem>>, vector<1x128xf32>
      %74 = arith.mulf %51, %51 : vector<8x128xf32>
      %cst_48 = arith.constant dense<0.000000e+00> : vector<128xf32>
      %75 = vector.multi_reduction <add>, %74, %cst_48 [0] : vector<8x128xf32> to vector<128xf32>
      %76 = vector.shape_cast %75 : vector<128xf32> to vector<1x128xf32>
      %77 = arith.addf %73, %76 : vector<1x128xf32>
      %c0_49 = arith.constant 0 : index
      %c0_50 = arith.constant 0 : index
      %78 = vector.load %arg12[%c0_49, %c0_50] : memref<1x128xf32, #tpu.memory_space<vmem>>, vector<1x128xf32>
      tpu.vector_store %arg12[%c0_49, %c0_50], %77 {strides = array<i32>} : memref<1x128xf32, #tpu.memory_space<vmem>>, vector<1x128xf32>,
    } else {
    }
    %c1_i32 = arith.constant 1 : i32
    %60 = arith.cmpi eq, %arg0, %c1_i32 : i32
    %c0_i32_37 = arith.constant 0 : i32
    %61 = arith.cmpi eq, %arg1, %c0_i32_37 : i32
    %62 = arith.andi %60, %61 : i1
    %63 = arith.extui %62 : i1 to i32
    %c0_i32_38 = arith.constant 0 : i32
    %64 = arith.cmpi ne, %63, %c0_i32_38 : i32
    scf.if %64 {
      %c0_41 = arith.constant 0 : index
      %c0_42 = arith.constant 0 : index
      %68 = vector.load %arg11[%c0_41, %c0_42] : memref<1x128xf32, #tpu.memory_space<vmem>>, vector<1x128xf32>
      %c0_43 = arith.constant 0 : index
      %c0_44 = arith.constant 0 : index
      %69 = vector.load %arg6[%c0_43, %c0_44] : memref<128x4xf32, #tpu.memory_space<vmem>>, vector<128x4xf32>
      %cst_45 = arith.constant dense<0.000000e+00> : vector<1x4xf32>
      %70 = tpu.matmul %68, %69, %cst_45 {dimension_numbers = #tpu.dot_dimension_numbers<[1], [0], [0], [1], [0, 0, 1, 1], [], []>} : vector<1x128xf32>, vector<128x4xf32>, vector<1x4xf32> -> vector<1x4xf32>
      %cst_46 = arith.constant 0.001953125 : f32
      %71 = vector.broadcast %cst_46 : f32 to vector<1x4xf32>
      %72 = arith.mulf %70, %71 : vector<1x4xf32>
      %c0_47 = arith.constant 0 : index
      %c0_48 = arith.constant 0 : index
      %73 = vector.load %arg12[%c0_47, %c0_48] : memref<1x128xf32, #tpu.memory_space<vmem>>, vector<1x128xf32>
      %c0_49 = arith.constant 0 : index
      %c0_50 = arith.constant 0 : index
      %74 = vector.load %arg6[%c0_49, %c0_50] : memref<128x4xf32, #tpu.memory_space<vmem>>, vector<128x4xf32>
      %cst_51 = arith.constant dense<0.000000e+00> : vector<1x4xf32>
      %75 = tpu.matmul %73, %74, %cst_51 {dimension_numbers = #tpu.dot_dimension_numbers<[1], [0], [0], [1], [0, 0, 1, 1], [], []>} : vector<1x128xf32>, vector<128x4xf32>, vector<1x4xf32> -> vector<1x4xf32>
      %cst_52 = arith.constant 0.001953125 : f32
      %76 = vector.broadcast %cst_52 : f32 to vector<1x4xf32>
      %77 = arith.mulf %75, %76 : vector<1x4xf32>
      %78 = arith.mulf %72, %72 : vector<1x4xf32>
      %79 = arith.subf %77, %78 : vector<1x4xf32>
      %c0_53 = arith.constant 0 : index
      %c0_54 = arith.constant 0 : index
      %80 = vector.load %arg8[%c0_53, %c0_54] : memref<1x4xf32, #tpu.memory_space<vmem>>, vector<1x4xf32>
      %cst_55 = arith.constant 9.99999974E-6 : f32
      %81 = vector.broadcast %cst_55 : f32 to vector<1x4xf32>
      %82 = arith.addf %79, %81 : vector<1x4xf32>
      %83 = math.rsqrt %82 : vector<1x4xf32>
      %84 = arith.mulf %80, %83 : vector<1x4xf32>
      %c0_56 = arith.constant 0 : index
      %c0_57 = arith.constant 0 : index
      %85 = vector.load %arg9[%c0_56, %c0_57] : memref<1x4xf32, #tpu.memory_space<vmem>>, vector<1x4xf32>
      %86 = arith.mulf %72, %84 : vector<1x4xf32>
      %87 = arith.subf %85, %86 : vector<1x4xf32>
      %c0_58 = arith.constant 0 : index
      %c0_59 = arith.constant 0 : index
      %88 = vector.load %arg7[%c0_58, %c0_59] : memref<4x128xf32, #tpu.memory_space<vmem>>, vector<4x128xf32>
      %cst_60 = arith.constant dense<0.000000e+00> : vector<1x128xf32>
      %89 = tpu.matmul %84, %88, %cst_60 {dimension_numbers = #tpu.dot_dimension_numbers<[1], [0], [0], [1], [0, 0, 1, 1], [], []>} : vector<1x4xf32>, vector<4x128xf32>, vector<1x128xf32> -> vector<1x128xf32>
      %c0_61 = arith.constant 0 : index
      %c0_62 = arith.constant 0 : index
      %90 = vector.load %arg13[%c0_61, %c0_62] : memref<1x128xf32, #tpu.memory_space<vmem>>, vector<1x128xf32>
      tpu.vector_store %arg13[%c0_61, %c0_62], %89 {strides = array<i32>} : memref<1x128xf32, #tpu.memory_space<vmem>>, vector<1x128xf32>,
      %c0_63 = arith.constant 0 : index
      %c0_64 = arith.constant 0 : index
      %91 = vector.load %arg7[%c0_63, %c0_64] : memref<4x128xf32, #tpu.memory_space<vmem>>, vector<4x128xf32>
      %cst_65 = arith.constant dense<0.000000e+00> : vector<1x128xf32>
      %92 = tpu.matmul %87, %91, %cst_65 {dimension_numbers = #tpu.dot_dimension_numbers<[1], [0], [0], [1], [0, 0, 1, 1], [], []>} : vector<1x4xf32>, vector<4x128xf32>, vector<1x128xf32> -> vector<1x128xf32>
      %c0_66 = arith.constant 0 : index
      %c0_67 = arith.constant 0 : index
      %93 = vector.load %arg14[%c0_66, %c0_67] : memref<1x128xf32, #tpu.memory_space<vmem>>, vector<1x128xf32>
      tpu.vector_store %arg14[%c0_66, %c0_67], %92 {strides = array<i32>} : memref<1x128xf32, #tpu.memory_space<vmem>>, vector<1x128xf32>,
    } else {
    }
    %c1_i32_39 = arith.constant 1 : i32
    %65 = arith.cmpi eq, %arg0, %c1_i32_39 : i32
    %66 = arith.extui %65 : i1 to i32
    %c0_i32_40 = arith.constant 0 : i32
    %67 = arith.cmpi ne, %66, %c0_i32_40 : i32
    scf.if %67 {
      %c0_41 = arith.constant 0 : index
      %c0_42 = arith.constant 0 : index
      %68 = vector.load %arg13[%c0_41, %c0_42] : memref<1x128xf32, #tpu.memory_space<vmem>>, vector<1x128xf32>
      %69 = vector.broadcast %68 : vector<1x128xf32> to vector<8x128xf32>
      %70 = arith.mulf %51, %69 : vector<8x128xf32>
      %c0_43 = arith.constant 0 : index
      %c0_44 = arith.constant 0 : index
      %71 = vector.load %arg14[%c0_43, %c0_44] : memref<1x128xf32, #tpu.memory_space<vmem>>, vector<1x128xf32>
      %72 = vector.broadcast %71 : vector<1x128xf32> to vector<8x128xf32>
      %73 = arith.addf %70, %72 : vector<8x128xf32>
      %74 = tpu.concatenate %7, %73 in 1 : vector<8x128xf32>, vector<8x128xf32> -> vector<8x256xf32>
      %c0_45 = arith.constant 0 : index
      %c0_46 = arith.constant 0 : index
      %75 = vector.load %arg10[%c0_45, %c0_46] : memref<8x256xf32, #tpu.memory_space<vmem>>, vector<8x256xf32>
      tpu.vector_store %arg10[%c0_45, %c0_46], %74 {strides = array<i32>} : memref<8x256xf32, #tpu.memory_space<vmem>>, vector<8x256xf32>,
    } else {
    }
    return
  }
  func.func @transform_0(%arg0: i32, %arg1: i32) -> (i32, i32) {
    %c0_i32 = arith.constant 0 : i32
    %c0_i32_0 = arith.constant 0 : i32
    %c0_i32_1 = arith.constant 0 : i32
    return %c0_i32, %c0_i32_0 : i32, i32
  }
  func.func @transform_1(%arg0: i32, %arg1: i32) -> (i32, i32) {
    %c0_i32 = arith.constant 0 : i32
    %c0_i32_0 = arith.constant 0 : i32
    return %arg1, %c0_i32 : i32, i32
  }
  func.func @transform_2(%arg0: i32, %arg1: i32) -> (i32, i32, i32) {
    %c0_i32 = arith.constant 0 : i32
    %c0_i32_0 = arith.constant 0 : i32
    %c0_i32_1 = arith.constant 0 : i32
    %c0_i32_2 = arith.constant 0 : i32
    return %c0_i32, %c0_i32_0, %c0_i32_1 : i32, i32, i32
  }
  func.func @transform_3(%arg0: i32, %arg1: i32) -> (i32, i32, i32) {
    %c0_i32 = arith.constant 0 : i32
    %c0_i32_0 = arith.constant 0 : i32
    %c0_i32_1 = arith.constant 0 : i32
    %c0_i32_2 = arith.constant 0 : i32
    return %c0_i32, %c0_i32_0, %c0_i32_1 : i32, i32, i32
  }
  func.func @transform_4(%arg0: i32, %arg1: i32) -> (i32, i32) {
    %c0_i32 = arith.constant 0 : i32
    %c0_i32_0 = arith.constant 0 : i32
    %c0_i32_1 = arith.constant 0 : i32
    return %c0_i32, %c0_i32_0 : i32, i32
  }
  func.func @transform_5(%arg0: i32, %arg1: i32) -> (i32, i32) {
    %c0_i32 = arith.constant 0 : i32
    %c0_i32_0 = arith.constant 0 : i32
    %c0_i32_1 = arith.constant 0 : i32
    return %c0_i32, %c0_i32_0 : i32, i32
  }
  func.func @transform_6(%arg0: i32, %arg1: i32) -> (i32, i32) {
    %c0_i32 = arith.constant 0 : i32
    %c0_i32_0 = arith.constant 0 : i32
    %c0_i32_1 = arith.constant 0 : i32
    return %c0_i32, %c0_i32_0 : i32, i32
  }
  func.func @transform_7(%arg0: i32, %arg1: i32) -> (i32, i32) {
    %c0_i32 = arith.constant 0 : i32
    %c0_i32_0 = arith.constant 0 : i32
    %c0_i32_1 = arith.constant 0 : i32
    return %c0_i32, %c0_i32_0 : i32, i32
  }
  func.func @transform_8(%arg0: i32, %arg1: i32) -> (i32, i32) {
    %c0_i32 = arith.constant 0 : i32
    %c0_i32_0 = arith.constant 0 : i32
    return %arg1, %c0_i32 : i32, i32
  }
}

</mosaic_0001>

<llo_original>
// kernel: unet_innermost_forward.1
$region0: #{unet_innermost_forward.1}
  #allocation0 [shape = 'u32[]', space=smem, size = 0x4, offset = 0x4, fixed_abs, tag = 'smem constant byte address 0x4 - core index']
  #allocation1 [shape = 'u32[144,128]{1,0:T(1,128)}', space=vmem, size = 0x12000, scoped, tag = 'internal scratch']
  #allocation2 [shape = 'f32[1,128]{1,0:T(1,128)}', space=vmem, size = 0x200, scoped, tag = 'scratch operand']
  #allocation3 [shape = 'f32[1,128]{1,0:T(1,128)}', space=vmem, size = 0x200, scoped, tag = 'scratch operand']
  #allocation4 [shape = 'f32[1,128]{1,0:T(1,128)}', space=vmem, size = 0x200, scoped, tag = 'scratch operand']
  #allocation5 [shape = 'f32[1,128]{1,0:T(1,128)}', space=vmem, size = 0x200, scoped, tag = 'scratch operand']
  %s0 = inlined_call_operand.vmem [shape: f32[8,2], index: 0, kind: input, shape index: {}]
  %s1 = inlined_call_operand.vmem [shape: f32[16,128], index: 1, kind: input, shape index: {}]
  %s2 = inlined_call_operand.vmem [shape: f32[3,128,64], index: 2, kind: input, shape index: {}]
  %s3 = inlined_call_operand.vmem [shape: f32[3,64,128], index: 3, kind: input, shape index: {}]
  %s4 = inlined_call_operand.vmem [shape: f32[128,4], index: 4, kind: input, shape index: {}]
  %s5 = inlined_call_operand.vmem [shape: f32[4,128], index: 5, kind: input, shape index: {}]
  %s6 = inlined_call_operand.vmem [shape: f32[1,4], index: 6, kind: input, shape index: {}]
  %s7 = inlined_call_operand.vmem [shape: f32[1,4], index: 7, kind: input, shape index: {}]
  %s8 = inlined_call_operand.vmem [shape: f32[16,256], index: 8, kind: output, shape index: {}]
  %s9 = sld [smem:[#allocation0]]
  $region81: #{unet_innermost_forward.1} parent=0
    _
  %s11 = ssub.s32 1, %s9
  %s12 = scalar_select 0, %s11, %s9
  loop: start=0, step=1, limit=6
  $region2: #{unet_innermost_forward.1} parent=0 // loop_pre_header
    _
  $region3: #{unet_innermost_forward.1} parent=0 // loop_header
    %s14 = sphi 0, %s18
    %p15 = scmp.ge.s32.totalorder %s14, 6
    %s21 = sphi 0, %s33
    %s22 = sphi 0, %s29
    %s23 = sphi 0, %s21
    %s24 = sphi 0, %s22
    %s25 = sphi 0, %s23
    %s26 = sphi 0, %s24
    %s34 = sphi 0, %s34
    %s36 = sphi 0, %s34
    %s37 = sphi 0, %s36
    %s51 = sphi 0, %s37
    %s57 = sphi 0, %s59
    %s60 = sphi 0, %s57
    %s61 = sphi 0, %s60
    %s77 = sphi 0, %s61
    %s81 = sphi 0, %s81
    %s83 = sphi 0, %s81
    %s84 = sphi 0, %s83
    %s98 = sphi 0, %s84
    %s102 = sphi 0, %s102
    %s104 = sphi 0, %s102
    %s105 = sphi 0, %s104
    %s119 = sphi 0, %s105
    %s123 = sphi 0, %s123
    %s125 = sphi 0, %s123
    %s126 = sphi 0, %s125
    %s140 = sphi 0, %s126
    %s144 = sphi 0, %s144
    %s146 = sphi 0, %s144
    %s147 = sphi 0, %s146
    %s161 = sphi 0, %s147
    %s165 = sphi 0, %s165
    %s167 = sphi 0, %s165
    %s168 = sphi 0, %s167
    %s182 = sphi 0, %s168
    %s186 = sphi 0, %s186
    %s188 = sphi 0, %s186
    %s189 = sphi 0, %s188
    %s203 = sphi 0, %s189
    %s209 = sphi 0, %s211
    %s212 = sphi 0, %s209
    %s213 = sphi 0, %s212
    %s229 = sphi 0, %s213
  $region4: #{unet_innermost_forward.1} parent=0 // loop_header_branch
    %17 = sbr.rel (%p15) target = $region8
  $region5: #{unet_innermost_forward.1} parent=0 // loop_body
    %s19 = ssub.s32 %s14, 1
    %s20 = ssub.s32 %s14, 2
    %s27 = sadd.s32 1, %s22
    %p28 = scmp.ge.s32.totalorder %s27, 2
    %s29 = scalar_select %p28, 0, %s27
    %s30 = sadd.s32 1, %s21
    %s31 = scalar_select %p28, %s30, %s21
    %p32 = scmp.ge.s32.totalorder %s31, 2
    %s33 = scalar_select %p32, 0, %s31
    %s35 = sadd.s32 %s34, 1
    %p38 = scmp.eq.s32.totalorder %s14, 3
    %p39 = scmp.ne.s32.totalorder %s34, %s36
    %p40 = scmp.eq.s32.totalorder %s14, 0
    %p41 = por %p39, %p40
    %p42 = scmp.ne.s32.totalorder %s34, %s36
    %p43 = scmp.eq.s32.totalorder %s19, 3
    %p44 = por %p42, %p43
    %p45 = scmp.ne.s32.totalorder %s36, %s37
    %p46 = scmp.eq.s32.totalorder %s19, 0
    %p47 = por %p45, %p46
    %p48 = scmp.ne.s32.totalorder %s36, %s37
    %p49 = scmp.eq.s32.totalorder %s20, 3
    %p50 = por %p48, %p49
    %p52 = scmp.ne.s32.totalorder %s37, %s51
    %p53 = scmp.eq.s32.totalorder %s20, 0
    %p54 = por %p52, %p53
    %s55 = ssub.s32 %s22, %s29
    %p56 = scmp.eq.s32.totalorder %s55, 0
    %s58 = sadd.s32 %s57, 1
    %s59 = scalar_select %p56, %s57, %s58
    %p62 = pneg %p56
    %p63 = scmp.eq.s32.totalorder %s14, 3
    %p64 = por %p62, %p63
    %p65 = scmp.ne.s32.totalorder %s57, %s60
    %p66 = scmp.eq.s32.totalorder %s14, 0
    %p67 = por %p65, %p66
    %p68 = scmp.ne.s32.totalorder %s57, %s60
    %p69 = scmp.eq.s32.totalorder %s19, 3
    %p70 = por %p68, %p69
    %p71 = scmp.ne.s32.totalorder %s60, %s61
    %p72 = scmp.eq.s32.totalorder %s19, 0
    %p73 = por %p71, %p72
    %p74 = scmp.ne.s32.totalorder %s60, %s61
    %p75 = scmp.eq.s32.totalorder %s20, 3
    %p76 = por %p74, %p75
    %p78 = scmp.ne.s32.totalorder %s61, %s77
    %p79 = scmp.eq.s32.totalorder %s20, 0
    %p80 = por %p78, %p79
    %s82 = sadd.s32 %s81, 1
    %p85 = scmp.eq.s32.totalorder %s14, 3
    %p86 = scmp.ne.s32.totalorder %s81, %s83
    %p87 = scmp.eq.s32.totalorder %s14, 0
    %p88 = por %p86, %p87
    %p89 = scmp.ne.s32.totalorder %s81, %s83
    %p90 = scmp.eq.s32.totalorder %s19, 3
    %p91 = por %p89, %p90
    %p92 = scmp.ne.s32.totalorder %s83, %s84
    %p93 = scmp.eq.s32.totalorder %s19, 0
    %p94 = por %p92, %p93
    %p95 = scmp.ne.s32.totalorder %s83, %s84
    %p96 = scmp.eq.s32.totalorder %s20, 3
    %p97 = por %p95, %p96
    %p99 = scmp.ne.s32.totalorder %s84, %s98
    %p100 = scmp.eq.s32.totalorder %s20, 0
    %p101 = por %p99, %p100
    %s103 = sadd.s32 %s102, 1
    %p106 = scmp.eq.s32.totalorder %s14, 3
    %p107 = scmp.ne.s32.totalorder %s102, %s104
    %p108 = scmp.eq.s32.totalorder %s14, 0
    %p109 = por %p107, %p108
    %p110 = scmp.ne.s32.totalorder %s102, %s104
    %p111 = scmp.eq.s32.totalorder %s19, 3
    %p112 = por %p110, %p111
    %p113 = scmp.ne.s32.totalorder %s104, %s105
    %p114 = scmp.eq.s32.totalorder %s19, 0
    %p115 = por %p113, %p114
    %p116 = scmp.ne.s32.totalorder %s104, %s105
    %p117 = scmp.eq.s32.totalorder %s20, 3
    %p118 = por %p116, %p117
    %p120 = scmp.ne.s32.totalorder %s105, %s119
    %p121 = scmp.eq.s32.totalorder %s20, 0
    %p122 = por %p120, %p121
    %s124 = sadd.s32 %s123, 1
    %p127 = scmp.eq.s32.totalorder %s14, 3
    %p128 = scmp.ne.s32.totalorder %s123, %s125
    %p129 = scmp.eq.s32.totalorder %s14, 0
    %p130 = por %p128, %p129
    %p131 = scmp.ne.s32.totalorder %s123, %s125
    %p132 = scmp.eq.s32.totalorder %s19, 3
    %p133 = por %p131, %p132
    %p134 = scmp.ne.s32.totalorder %s125, %s126
    %p135 = scmp.eq.s32.totalorder %s19, 0
    %p136 = por %p134, %p135
    %p137 = scmp.ne.s32.totalorder %s125, %s126
    %p138 = scmp.eq.s32.totalorder %s20, 3
    %p139 = por %p137, %p138
    %p141 = scmp.ne.s32.totalorder %s126, %s140
    %p142 = scmp.eq.s32.totalorder %s20, 0
    %p143 = por %p141, %p142
    %s145 = sadd.s32 %s144, 1
    %p148 = scmp.eq.s32.totalorder %s14, 3
    %p149 = scmp.ne.s32.totalorder %s144, %s146
    %p150 = scmp.eq.s32.totalorder %s14, 0
    %p151 = por %p149, %p150
    %p152 = scmp.ne.s32.totalorder %s144, %s146
    %p153 = scmp.eq.s32.totalorder %s19, 3
    %p154 = por %p152, %p153
    %p155 = scmp.ne.s32.totalorder %s146, %s147
    %p156 = scmp.eq.s32.totalorder %s19, 0
    %p157 = por %p155, %p156
    %p158 = scmp.ne.s32.totalorder %s146, %s147
    %p159 = scmp.eq.s32.totalorder %s20, 3
    %p160 = por %p158, %p159
    %p162 = scmp.ne.s32.totalorder %s147, %s161
    %p163 = scmp.eq.s32.totalorder %s20, 0
    %p164 = por %p162, %p163
    %s166 = sadd.s32 %s165, 1
    %p169 = scmp.eq.s32.totalorder %s14, 3
    %p170 = scmp.ne.s32.totalorder %s165, %s167
    %p171 = scmp.eq.s32.totalorder %s14, 0
    %p172 = por %p170, %p171
    %p173 = scmp.ne.s32.totalorder %s165, %s167
    %p174 = scmp.eq.s32.totalorder %s19, 3
    %p175 = por %p173, %p174
    %p176 = scmp.ne.s32.totalorder %s167, %s168
    %p177 = scmp.eq.s32.totalorder %s19, 0
    %p178 = por %p176, %p177
    %p179 = scmp.ne.s32.totalorder %s167, %s168
    %p180 = scmp.eq.s32.totalorder %s20, 3
    %p181 = por %p179, %p180
    %p183 = scmp.ne.s32.totalorder %s168, %s182
    %p184 = scmp.eq.s32.totalorder %s20, 0
    %p185 = por %p183, %p184
    %s187 = sadd.s32 %s186, 1
    %p190 = scmp.eq.s32.totalorder %s14, 3
    %p191 = scmp.ne.s32.totalorder %s186, %s188
    %p192 = scmp.eq.s32.totalorder %s14, 0
    %p193 = por %p191, %p192
    %p194 = scmp.ne.s32.totalorder %s186, %s188
    %p195 = scmp.eq.s32.totalorder %s19, 3
    %p196 = por %p194, %p195
    %p197 = scmp.ne.s32.totalorder %s188, %s189
    %p198 = scmp.eq.s32.totalorder %s19, 0
    %p199 = por %p197, %p198
    %p200 = scmp.ne.s32.totalorder %s188, %s189
    %p201 = scmp.eq.s32.totalorder %s20, 3
    %p202 = por %p200, %p201
    %p204 = scmp.ne.s32.totalorder %s189, %s203
    %p205 = scmp.eq.s32.totalorder %s20, 0
    %p206 = por %p204, %p205
    %s207 = ssub.s32 %s22, %s29
    %p208 = scmp.eq.s32.totalorder %s207, 0
    %s210 = sadd.s32 %s209, 1
    %s211 = scalar_select %p208, %s209, %s210
    %p214 = pneg %p208
    %p215 = scmp.eq.s32.totalorder %s14, 3
    %p216 = por %p214, %p215
    %p217 = scmp.ne.s32.totalorder %s209, %s212
    %p218 = scmp.eq.s32.totalorder %s14, 0
    %p219 = por %p217, %p218
    %p220 = scmp.ne.s32.totalorder %s209, %s212
    %p221 = scmp.eq.s32.totalorder %s19, 3
    %p222 = por %p220, %p221
    %p223 = scmp.ne.s32.totalorder %s212, %s213
    %p224 = scmp.eq.s32.totalorder %s19, 0
    %p225 = por %p223, %p224
    %p226 = scmp.ne.s32.totalorder %s212, %s213
    %p227 = scmp.eq.s32.totalorder %s20, 3
    %p228 = por %p226, %p227
    %p230 = scmp.ne.s32.totalorder %s213, %s229
    %p231 = scmp.eq.s32.totalorder %s20, 0
    %p232 = por %p230, %p231
    %p233 = scmp.le.s32.totalorder 1, %s14
    %p234 = scmp.lt.s32.totalorder %s14, 5
    %p235 = pnand %p233, %p234
    %p236 = pneg %p235
    // Predicated region
    $region9: #{unet_innermost_forward.1} parent=5 // pred_check
      _
    $region10: #{unet_innermost_forward.1} parent=5 // pred_check_branch
      %238 = sbr.rel (%p235) target = $region12
    $region11: #{unet_innermost_forward.1} parent=5 // pred_region
      %s239 = ssub.s32 %s14, 1
      // Predicated region
      $region13: #{unet_innermost_forward.1} parent=11 // pred_check
        %p240 = pneg %p47
      $region14: #{unet_innermost_forward.1} parent=11 // pred_check_branch
        %242 = sbr.rel (%p240) target = $region16
      $region15: #{unet_innermost_forward.1} parent=11 // pred_region
        _
      $region16: #{unet_innermost_forward.1} parent=11 // pred_fallthru
        _
      // Predicated region
      $region17: #{unet_innermost_forward.1} parent=11 // pred_check
        %p243 = pneg %p94
      $region18: #{unet_innermost_forward.1} parent=11 // pred_check_branch
        %245 = sbr.rel (%p243) target = $region20
      $region19: #{unet_innermost_forward.1} parent=11 // pred_region
        _
      $region20: #{unet_innermost_forward.1} parent=11 // pred_fallthru
        _
      // Predicated region
      $region21: #{unet_innermost_forward.1} parent=11 // pred_check
        %p246 = pneg %p115
      $region22: #{unet_innermost_forward.1} parent=11 // pred_check_branch
        %248 = sbr.rel (%p246) target = $region24
      $region23: #{unet_innermost_forward.1} parent=11 // pred_region
        _
      $region24: #{unet_innermost_forward.1} parent=11 // pred_fallthru
        _
      // Predicated region
      $region25: #{unet_innermost_forward.1} parent=11 // pred_check
        %p249 = pneg %p136
      $region26: #{unet_innermost_forward.1} parent=11 // pred_check_branch
        %251 = sbr.rel (%p249) target = $region28
      $region27: #{unet_innermost_forward.1} parent=11 // pred_region
        _
      $region28: #{unet_innermost_forward.1} parent=11 // pred_fallthru
        _
      // Predicated region
      $region29: #{unet_innermost_forward.1} parent=11 // pred_check
        %p252 = pneg %p157
      $region30: #{unet_innermost_forward.1} parent=11 // pred_check_branch
        %254 = sbr.rel (%p252) target = $region32
      $region31: #{unet_innermost_forward.1} parent=11 // pred_region
        _
      $region32: #{unet_innermost_forward.1} parent=11 // pred_fallthru
        _
      // Predicated region
      $region33: #{unet_innermost_forward.1} parent=11 // pred_check
        %p255 = pneg %p178
      $region34: #{unet_innermost_forward.1} parent=11 // pred_check_branch
        %257 = sbr.rel (%p255) target = $region36
      $region35: #{unet_innermost_forward.1} parent=11 // pred_region
        _
      $region36: #{unet_innermost_forward.1} parent=11 // pred_fallthru
        _
      // Predicated region
      $region37: #{unet_innermost_forward.1} parent=11 // pred_check
        %p258 = pneg %p199
      $region38: #{unet_innermost_forward.1} parent=11 // pred_check_branch
        %260 = sbr.rel (%p258) target = $region40
      $region39: #{unet_innermost_forward.1} parent=11 // pred_region
        _
      $region40: #{unet_innermost_forward.1} parent=11 // pred_fallthru
        _
    $region12: #{unet_innermost_forward.1} parent=5 // pred_fallthru
      _
    %p261 = scmp.lt.s32.totalorder %s14, 4
    // Predicated region
    $region41: #{unet_innermost_forward.1} parent=5 // pred_check
      %p262 = pneg %p261
    $region42: #{unet_innermost_forward.1} parent=5 // pred_check_branch
      %264 = sbr.rel (%p262) target = $region44
    $region43: #{unet_innermost_forward.1} parent=5 // pred_region
      // Predicated region
      $region45: #{unet_innermost_forward.1} parent=43 // pred_check
        %p265 = pneg %p67
      $region46: #{unet_innermost_forward.1} parent=43 // pred_check_branch
        %267 = sbr.rel (%p265) target = $region48
      $region47: #{unet_innermost_forward.1} parent=43 // pred_region
        %p268 = scmp.lt.s32.totalorder %s22, 1
        %s269 = scalar_select %p268, %s22, 1
        %s270 = smul.addr %s269, 8
        %s271 = scalar_lea.vmem %s1, %s270
      $region48: #{unet_innermost_forward.1} parent=43 // pred_fallthru
        _
    $region44: #{unet_innermost_forward.1} parent=5 // pred_fallthru
      _
    %p272 = scmp.le.s32.totalorder 1, %s14
    %p273 = scmp.lt.s32.totalorder %s14, 5
    %p274 = pnand %p272, %p273
    %p275 = pneg %p274
    // Predicated region
    $region49: #{unet_innermost_forward.1} parent=5 // pred_check
      _
    $region50: #{unet_innermost_forward.1} parent=5 // pred_check_branch
      %277 = sbr.rel (%p274) target = $region52
    $region51: #{unet_innermost_forward.1} parent=5 // pred_region
      %s278 = ssub.s32 %s14, 1
      %p279 = pneg %p47
      %p280 = pneg %p44
      %p281 = scmp.lt.s32.totalorder %s24, 1
      %s282 = scalar_select %p281, %s24, 1
      %s283 = smul.addr %s282, 8
      %s284 = scalar_lea.vmem %s1, %s283
      %p285 = pneg %p73
      %p286 = pneg %p70
      %p287 = pneg %p94
      %p288 = pneg %p91
      %p289 = pneg %p115
      %p290 = pneg %p112
      %p291 = pneg %p136
      %p292 = pneg %p133
      %p293 = pneg %p157
      %p294 = pneg %p154
      %p295 = pneg %p178
      %p296 = pneg %p175
      %p297 = pneg %p199
      %p298 = pneg %p196
      %p299 = pneg %p225
      %p300 = pneg %p222
      %p301 = scmp.lt.s32.totalorder %s24, 1
      %s302 = scalar_select %p301, %s24, 1
      %s303 = smul.addr %s302, 2
      %s304 = smul.addr %s303, 8
      %s305 = scalar_lea.vmem %s8, %s304
      %p306 = scmp.lt.s32.totalorder %s24, 1
      %s307 = scalar_select %p306, %s24, 1
      %s308 = smul.addr %s307, 8
      %s309 = scalar_lea.vmem %s1, %s308
      %p310 = scmp.lt.s32.totalorder %s24, 1
      %s311 = scalar_select %p310, %s24, 1
      %s312 = smul.addr %s311, 2
      %s313 = smul.addr %s312, 8
      %s314 = scalar_lea.vmem %s8, %s313
      %v315 = vld [vmem:[%s0] sm:$0xff]
      %v316 = vld [vmem:[%s309] sm:$0xff]
      %vm317 = vcmp.gt.f32.partialorder %v316, 0.0
      %v318 = vmul.f32 %v316, 0.2
      %v319 = vsel %vm317, %v316, %v318
      %s320 = scalar_lea.vmem %s2, 128
      %v321 = vld [vmem:[%s320] sm:$0xff]
      %v322 = vld [vmem:[%s320 + $0x8] sm:$0xff]
      %v323 = vld [vmem:[%s320 + $0x10] sm:$0xff]
      %v324 = vld [vmem:[%s320 + $0x18] sm:$0xff]
      %v325 = vld [vmem:[%s320 + $0x20] sm:$0xff]
      %v326 = vld [vmem:[%s320 + $0x28] sm:$0xff]
      %v327 = vld [vmem:[%s320 + $0x30] sm:$0xff]
      %v328 = vld [vmem:[%s320 + $0x38] sm:$0xff]
      %v329 = vld [vmem:[%s320 + $0x40] sm:$0xff]
      %v330 = vld [vmem:[%s320 + $0x48] sm:$0xff]
      %v331 = vld [vmem:[%s320 + $0x50] sm:$0xff]
      %v332 = vld [vmem:[%s320 + $0x58] sm:$0xff]
      %v333 = vld [vmem:[%s320 + $0x60] sm:$0xff]
      %v334 = vld [vmem:[%s320 + $0x68] sm:$0xff]
      %v335 = vld [vmem:[%s320 + $0x70] sm:$0xff]
      %v336 = vld [vmem:[%s320 + $0x78] sm:$0xff]
      %v338 = vrot.slane %v319, 7
      %vm340 = vcmask 1040384
      %v341 = vsel %vm340, 0.0, %v338
      %343 = vset.pattern.permute.xlu0 0
      %344 = vperm.xlu0 %343, %v315
      %v345 = vpop.permute.xlu0 %344
      %v347 = vmul.f32 %v341, %v345
      %v348 = vld [vmem:[%s2] sm:$0xff]
      %v349 = vld [vmem:[%s2 + $0x8] sm:$0xff]
      %v350 = vld [vmem:[%s2 + $0x10] sm:$0xff]
      %v351 = vld [vmem:[%s2 + $0x18] sm:$0xff]
      %v352 = vld [vmem:[%s2 + $0x20] sm:$0xff]
      %v353 = vld [vmem:[%s2 + $0x28] sm:$0xff]
      %v354 = vld [vmem:[%s2 + $0x30] sm:$0xff]
      %v355 = vld [vmem:[%s2 + $0x38] sm:$0xff]
      %v356 = vld [vmem:[%s2 + $0x40] sm:$0xff]
      %v357 = vld [vmem:[%s2 + $0x48] sm:$0xff]
      %v358 = vld [vmem:[%s2 + $0x50] sm:$0xff]
      %v359 = vld [vmem:[%s2 + $0x58] sm:$0xff]
      %v360 = vld [vmem:[%s2 + $0x60] sm:$0xff]
      %v361 = vld [vmem:[%s2 + $0x68] sm:$0xff]
      %v362 = vld [vmem:[%s2 + $0x70] sm:$0xff]
      %v363 = vld [vmem:[%s2 + $0x78] sm:$0xff]
      %364 = vmatprep.subr.mxu0 0.0
      %365 = vmatpush1.msra.mxu0 %v363
      %366 = vmatprep.subr.mxu0 0.0
      %367 = vmatpush1.msra.mxu0 %v362
      %368 = vmatprep.subr.mxu0 0.0
      %369 = vmatpush1.msra.mxu0 %v361
      %370 = vmatprep.subr.mxu0 0.0
      %371 = vmatpush1.msra.mxu0 %v360
      %372 = vmatprep.subr.mxu0 0.0
      %373 = vmatpush1.msra.mxu0 %v359
      %374 = vmatprep.subr.mxu0 0.0
      %375 = vmatpush1.msra.mxu0 %v358
      %376 = vmatprep.subr.mxu0 0.0
      %377 = vmatpush1.msra.mxu0 %v357
      %378 = vmatprep.subr.mxu0 0.0
      %379 = vmatpush1.msra.mxu0 %v356
      %380 = vmatprep.subr.mxu0 0.0
      %381 = vmatpush1.msra.mxu0 %v355
      %382 = vmatprep.subr.mxu0 0.0
      %383 = vmatpush1.msra.mxu0 %v354
      %384 = vmatprep.subr.mxu0 0.0
      %385 = vmatpush1.msra.mxu0 %v353
      %386 = vmatprep.subr.mxu0 0.0
      %387 = vmatpush1.msra.mxu0 %v352
      %388 = vmatprep.subr.mxu0 0.0
      %389 = vmatpush1.msra.mxu0 %v351
      %390 = vmatprep.subr.mxu0 0.0
      %391 = vmatpush1.msra.mxu0 %v350
      %392 = vmatprep.subr.mxu0 0.0
      %393 = vmatpush1.msra.mxu0 %v349
      %394 = vmatprep.subr.mxu0 0.0
      %395 = vmatpush1.msra.mxu0 %v348
      %396 = vmatprep.subr.mxu0 0.0
      %397 = vmatpush2.msra.mxu0 0.0
      %398 = vmatprep.subr.mxu0 0.0
      %399 = vmatpush2.msra.mxu0 0.0
      %400 = vmatprep.subr.mxu0 0.0
      %401 = vmatpush2.msra.mxu0 0.0
      %402 = vmatprep.subr.mxu0 0.0
      %403 = vmatpush2.msra.mxu0 0.0
      %404 = vmatprep.subr.mxu0 0.0
      %405 = vmatpush2.msra.mxu0 0.0
      %406 = vmatprep.subr.mxu0 0.0
      %407 = vmatpush2.msra.mxu0 0.0
      %408 = vmatprep.subr.mxu0 0.0
      %409 = vmatpush2.msra.mxu0 0.0
      %410 = vmatprep.subr.mxu0 0.0
      %411 = vmatpush2.msra.mxu0 0.0
      %412 = vmatprep.subr.mxu0 0.0
      %413 = vmatpush2.msra.mxu0 0.0
      %414 = vmatprep.subr.mxu0 0.0
      %415 = vmatpush2.msra.mxu0 0.0
      %416 = vmatprep.subr.mxu0 0.0
      %417 = vmatpush2.msra.mxu0 0.0
      %418 = vmatprep.subr.mxu0 0.0
      %419 = vmatpush2.msra.mxu0 0.0
      %420 = vmatprep.subr.mxu0 0.0
      %421 = vmatpush2.msra.mxu0 0.0
      %422 = vmatprep.subr.mxu0 0.0
      %423 = vmatpush2.msra.mxu0 0.0
      %424 = vmatprep.subr.mxu0 0.0
      %425 = vmatpush2.msra.mxu0 0.0
      %426 = vmatprep.subr.mxu0 0.0
      %427 = vmatpush2.msra.mxu0 0.0
      %428 = vmatprep.mubr.f32.mxu0 0.0
      %429 = vmatmul.mubr.f32.gmra.mxu0 %v347
      %v430 = vpop.f32.mrf.mxu0
      %v431 = vadd.f32 0.0, %v430
      %v432 = vpop.f32.mrf.mxu0
      %433 = vdwg.mxu0
      %434 = vmatprep.subr.mxu0 0.0
      %435 = vmatpush1.msra.mxu0 %v336
      %436 = vmatprep.subr.mxu0 0.0
      %437 = vmatpush1.msra.mxu0 %v335
      %438 = vmatprep.subr.mxu0 0.0
      %439 = vmatpush1.msra.mxu0 %v334
      %440 = vmatprep.subr.mxu0 0.0
      %441 = vmatpush1.msra.mxu0 %v333
      %442 = vmatprep.subr.mxu0 0.0
      %443 = vmatpush1.msra.mxu0 %v332
      %444 = vmatprep.subr.mxu0 0.0
      %445 = vmatpush1.msra.mxu0 %v331
      %446 = vmatprep.subr.mxu0 0.0
      %447 = vmatpush1.msra.mxu0 %v330
      %448 = vmatprep.subr.mxu0 0.0
      %449 = vmatpush1.msra.mxu0 %v329
      %450 = vmatprep.subr.mxu0 0.0
      %451 = vmatpush1.msra.mxu0 %v328
      %452 = vmatprep.subr.mxu0 0.0
      %453 = vmatpush1.msra.mxu0 %v327
      %454 = vmatprep.subr.mxu0 0.0
      %455 = vmatpush1.msra.mxu0 %v326
      %456 = vmatprep.subr.mxu0 0.0
      %457 = vmatpush1.msra.mxu0 %v325
      %458 = vmatprep.subr.mxu0 0.0
      %459 = vmatpush1.msra.mxu0 %v324
      %460 = vmatprep.subr.mxu0 0.0
      %461 = vmatpush1.msra.mxu0 %v323
      %462 = vmatprep.subr.mxu0 0.0
      %463 = vmatpush1.msra.mxu0 %v322
      %464 = vmatprep.subr.mxu0 0.0
      %465 = vmatpush1.msra.mxu0 %v321
      %466 = vmatprep.subr.mxu0 0.0
      %467 = vmatpush2.msra.mxu0 0.0
      %468 = vmatprep.subr.mxu0 0.0
      %469 = vmatpush2.msra.mxu0 0.0
      %470 = vmatprep.subr.mxu0 0.0
      %471 = vmatpush2.msra.mxu0 0.0
      %472 = vmatprep.subr.mxu0 0.0
      %473 = vmatpush2.msra.mxu0 0.0
      %474 = vmatprep.subr.mxu0 0.0
      %475 = vmatpush2.msra.mxu0 0.0
      %476 = vmatprep.subr.mxu0 0.0
      %477 = vmatpush2.msra.mxu0 0.0
      %478 = vmatprep.subr.mxu0 0.0
      %479 = vmatpush2.msra.mxu0 0.0
      %480 = vmatprep.subr.mxu0 0.0
      %481 = vmatpush2.msra.mxu0 0.0
      %482 = vmatprep.subr.mxu0 0.0
      %483 = vmatpush2.msra.mxu0 0.0
      %484 = vmatprep.subr.mxu0 0.0
      %485 = vmatpush2.msra.mxu0 0.0
      %486 = vmatprep.subr.mxu0 0.0
      %487 = vmatpush2.msra.mxu0 0.0
      %488 = vmatprep.subr.mxu0 0.0
      %489 = vmatpush2.msra.mxu0 0.0
      %490 = vmatprep.subr.mxu0 0.0
      %491 = vmatpush2.msra.mxu0 0.0
      %492 = vmatprep.subr.mxu0 0.0
      %493 = vmatpush2.msra.mxu0 0.0
      %494 = vmatprep.subr.mxu0 0.0
      %495 = vmatpush2.msra.mxu0 0.0
      %496 = vmatprep.subr.mxu0 0.0
      %497 = vmatpush2.msra.mxu0 0.0
      %498 = vmatprep.mubr.f32.mxu0 0.0
      %499 = vmatmul.mubr.f32.gmra.mxu0 %v319
      %v500 = vpop.f32.mrf.mxu0
      %v501 = vadd.f32 %v431, %v500
      %v502 = vpop.f32.mrf.mxu0
      %503 = vdwg.mxu0
      %v504 = vrot.slane %v319, 1
      %vm506 = vcmask 1046528
      %v507 = vsel %vm506, %v504, 0.0
      %508 = vset.pattern.permute.xlu0 1
      %509 = vperm.xlu0 %508, %v315
      %v510 = vpop.permute.xlu0 %509
      %v512 = vmul.f32 %v507, %v510
      %s513 = scalar_lea.vmem %s2, 256
      %v514 = vld [vmem:[%s513] sm:$0xff]
      %v515 = vld [vmem:[%s513 + $0x8] sm:$0xff]
      %v516 = vld [vmem:[%s513 + $0x10] sm:$0xff]
      %v517 = vld [vmem:[%s513 + $0x18] sm:$0xff]
      %v518 = vld [vmem:[%s513 + $0x20] sm:$0xff]
      %v519 = vld [vmem:[%s513 + $0x28] sm:$0xff]
      %v520 = vld [vmem:[%s513 + $0x30] sm:$0xff]
      %v521 = vld [vmem:[%s513 + $0x38] sm:$0xff]
      %v522 = vld [vmem:[%s513 + $0x40] sm:$0xff]
      %v523 = vld [vmem:[%s513 + $0x48] sm:$0xff]
      %v524 = vld [vmem:[%s513 + $0x50] sm:$0xff]
      %v525 = vld [vmem:[%s513 + $0x58] sm:$0xff]
      %v526 = vld [vmem:[%s513 + $0x60] sm:$0xff]
      %v527 = vld [vmem:[%s513 + $0x68] sm:$0xff]
      %v528 = vld [vmem:[%s513 + $0x70] sm:$0xff]
      %v529 = vld [vmem:[%s513 + $0x78] sm:$0xff]
      %530 = vmatprep.subr.mxu0 0.0
      %531 = vmatpush1.msra.mxu0 %v529
      %532 = vmatprep.subr.mxu0 0.0
      %533 = vmatpush1.msra.mxu0 %v528
      %534 = vmatprep.subr.mxu0 0.0
      %535 = vmatpush1.msra.mxu0 %v527
      %536 = vmatprep.subr.mxu0 0.0
      %537 = vmatpush1.msra.mxu0 %v526
      %538 = vmatprep.subr.mxu0 0.0
      %539 = vmatpush1.msra.mxu0 %v525
      %540 = vmatprep.subr.mxu0 0.0
      %541 = vmatpush1.msra.mxu0 %v524
      %542 = vmatprep.subr.mxu0 0.0
      %543 = vmatpush1.msra.mxu0 %v523
      %544 = vmatprep.subr.mxu0 0.0
      %545 = vmatpush1.msra.mxu0 %v522
      %546 = vmatprep.subr.mxu0 0.0
      %547 = vmatpush1.msra.mxu0 %v521
      %548 = vmatprep.subr.mxu0 0.0
      %549 = vmatpush1.msra.mxu0 %v520
      %550 = vmatprep.subr.mxu0 0.0
      %551 = vmatpush1.msra.mxu0 %v519
      %552 = vmatprep.subr.mxu0 0.0
      %553 = vmatpush1.msra.mxu0 %v518
      %554 = vmatprep.subr.mxu0 0.0
      %555 = vmatpush1.msra.mxu0 %v517
      %556 = vmatprep.subr.mxu0 0.0
      %557 = vmatpush1.msra.mxu0 %v516
      %558 = vmatprep.subr.mxu0 0.0
      %559 = vmatpush1.msra.mxu0 %v515
      %560 = vmatprep.subr.mxu0 0.0
      %561 = vmatpush1.msra.mxu0 %v514
      %562 = vmatprep.subr.mxu0 0.0
      %563 = vmatpush2.msra.mxu0 0.0
      %564 = vmatprep.subr.mxu0 0.0
      %565 = vmatpush2.msra.mxu0 0.0
      %566 = vmatprep.subr.mxu0 0.0
      %567 = vmatpush2.msra.mxu0 0.0
      %568 = vmatprep.subr.mxu0 0.0
      %569 = vmatpush2.msra.mxu0 0.0
      %570 = vmatprep.subr.mxu0 0.0
      %571 = vmatpush2.msra.mxu0 0.0
      %572 = vmatprep.subr.mxu0 0.0
      %573 = vmatpush2.msra.mxu0 0.0
      %574 = vmatprep.subr.mxu0 0.0
      %575 = vmatpush2.msra.mxu0 0.0
      %576 = vmatprep.subr.mxu0 0.0
      %577 = vmatpush2.msra.mxu0 0.0
      %578 = vmatprep.subr.mxu0 0.0
      %579 = vmatpush2.msra.mxu0 0.0
      %580 = vmatprep.subr.mxu0 0.0
      %581 = vmatpush2.msra.mxu0 0.0
      %582 = vmatprep.subr.mxu0 0.0
      %583 = vmatpush2.msra.mxu0 0.0
      %584 = vmatprep.subr.mxu0 0.0
      %585 = vmatpush2.msra.mxu0 0.0
      %586 = vmatprep.subr.mxu0 0.0
      %587 = vmatpush2.msra.mxu0 0.0
      %588 = vmatprep.subr.mxu0 0.0
      %589 = vmatpush2.msra.mxu0 0.0
      %590 = vmatprep.subr.mxu0 0.0
      %591 = vmatpush2.msra.mxu0 0.0
      %592 = vmatprep.subr.mxu0 0.0
      %593 = vmatpush2.msra.mxu0 0.0
      %594 = vmatprep.mubr.f32.mxu0 0.0
      %595 = vmatmul.mubr.f32.gmra.mxu0 %v512
      %v596 = vpop.f32.mrf.mxu0
      %v597 = vadd.f32 0.0, %v596
      %v598 = vpop.f32.mrf.mxu0
      %599 = vdwg.mxu0
      %v600 = vadd.f32 %v501, %v597
      %v601 = vmax.f32 %v600, 0.0
      %s602 = scalar_lea.vmem %s3, 64
      %v603 = vld [vmem:[%s602] sm:$0xff]
      %v604 = vld [vmem:[%s602 + $0x8] sm:$0xff]
      %v605 = vld [vmem:[%s602 + $0x10] sm:$0xff]
      %v606 = vld [vmem:[%s602 + $0x18] sm:$0xff]
      %v607 = vld [vmem:[%s602 + $0x20] sm:$0xff]
      %v608 = vld [vmem:[%s602 + $0x28] sm:$0xff]
      %v609 = vld [vmem:[%s602 + $0x30] sm:$0xff]
      %v610 = vld [vmem:[%s602 + $0x38] sm:$0xff]
      %v612 = vrot.slane %v601, 7
      %v614 = vsel %vm340, 0.0, %v612
      %v615 = vmul.f32 %v614, %v345
      %v616 = vld [vmem:[%s3] sm:$0xff]
      %v617 = vld [vmem:[%s3 + $0x8] sm:$0xff]
      %v618 = vld [vmem:[%s3 + $0x10] sm:$0xff]
      %v619 = vld [vmem:[%s3 + $0x18] sm:$0xff]
      %v620 = vld [vmem:[%s3 + $0x20] sm:$0xff]
      %v621 = vld [vmem:[%s3 + $0x28] sm:$0xff]
      %v622 = vld [vmem:[%s3 + $0x30] sm:$0xff]
      %v623 = vld [vmem:[%s3 + $0x38] sm:$0xff]
      %vm624 = vcmask 523264
      %v626 = vsel %vm624, %v615, 0
      %628 = vmatprep.subr.mxu0 0.0
      %629 = vmatpush1.msra.mxu0 0.0
      %630 = vmatprep.subr.mxu0 0.0
      %631 = vmatpush1.msra.mxu0 0.0
      %632 = vmatprep.subr.mxu0 0.0
      %633 = vmatpush1.msra.mxu0 0.0
      %634 = vmatprep.subr.mxu0 0.0
      %635 = vmatpush1.msra.mxu0 0.0
      %636 = vmatprep.subr.mxu0 0.0
      %637 = vmatpush1.msra.mxu0 0.0
      %638 = vmatprep.subr.mxu0 0.0
      %639 = vmatpush1.msra.mxu0 0.0
      %640 = vmatprep.subr.mxu0 0.0
      %641 = vmatpush1.msra.mxu0 0.0
      %642 = vmatprep.subr.mxu0 0.0
      %643 = vmatpush1.msra.mxu0 0.0
      %644 = vmatprep.subr.mxu0 0.0
      %645 = vmatpush1.msra.mxu0 %v623
      %646 = vmatprep.subr.mxu0 0.0
      %647 = vmatpush1.msra.mxu0 %v622
      %648 = vmatprep.subr.mxu0 0.0
      %649 = vmatpush1.msra.mxu0 %v621
      %650 = vmatprep.subr.mxu0 0.0
      %651 = vmatpush1.msra.mxu0 %v620
      %652 = vmatprep.subr.mxu0 0.0
      %653 = vmatpush1.msra.mxu0 %v619
      %654 = vmatprep.subr.mxu0 0.0
      %655 = vmatpush1.msra.mxu0 %v618
      %656 = vmatprep.subr.mxu0 0.0
      %657 = vmatpush1.msra.mxu0 %v617
      %658 = vmatprep.subr.mxu0 0.0
      %659 = vmatpush1.msra.mxu0 %v616
      %660 = vmatprep.subr.mxu0 0.0
      %661 = vmatpush2.msra.mxu0 0.0
      %662 = vmatprep.subr.mxu0 0.0
      %663 = vmatpush2.msra.mxu0 0.0
      %664 = vmatprep.subr.mxu0 0.0
      %665 = vmatpush2.msra.mxu0 0.0
      %666 = vmatprep.subr.mxu0 0.0
      %667 = vmatpush2.msra.mxu0 0.0
      %668 = vmatprep.subr.mxu0 0.0
      %669 = vmatpush2.msra.mxu0 0.0
      %670 = vmatprep.subr.mxu0 0.0
      %671 = vmatpush2.msra.mxu0 0.0
      %672 = vmatprep.subr.mxu0 0.0
      %673 = vmatpush2.msra.mxu0 0.0
      %674 = vmatprep.subr.mxu0 0.0
      %675 = vmatpush2.msra.mxu0 0.0
      %676 = vmatprep.subr.mxu0 0.0
      %677 = vmatpush2.msra.mxu0 0.0
      %678 = vmatprep.subr.mxu0 0.0
      %679 = vmatpush2.msra.mxu0 0.0
      %680 = vmatprep.subr.mxu0 0.0
      %681 = vmatpush2.msra.mxu0 0.0
      %682 = vmatprep.subr.mxu0 0.0
      %683 = vmatpush2.msra.mxu0 0.0
      %684 = vmatprep.subr.mxu0 0.0
      %685 = vmatpush2.msra.mxu0 0.0
      %686 = vmatprep.subr.mxu0 0.0
      %687 = vmatpush2.msra.mxu0 0.0
      %688 = vmatprep.subr.mxu0 0.0
      %689 = vmatpush2.msra.mxu0 0.0
      %690 = vmatprep.subr.mxu0 0.0
      %691 = vmatpush2.msra.mxu0 0.0
      %692 = vmatprep.mubr.f32.mxu0 0.0
      %693 = vmatmul.mubr.f32.gmra.mxu0 %v626
      %v694 = vpop.f32.mrf.mxu0
      %v695 = vadd.f32 0.0, %v694
      %v696 = vpop.f32.mrf.mxu0
      %697 = vdwg.mxu0
      %v698 = vsel %vm624, %v601, 0
      %700 = vmatprep.subr.mxu0 0.0
      %701 = vmatpush1.msra.mxu0 0.0
      %702 = vmatprep.subr.mxu0 0.0
      %703 = vmatpush1.msra.mxu0 0.0
      %704 = vmatprep.subr.mxu0 0.0
      %705 = vmatpush1.msra.mxu0 0.0
      %706 = vmatprep.subr.mxu0 0.0
      %707 = vmatpush1.msra.mxu0 0.0
      %708 = vmatprep.subr.mxu0 0.0
      %709 = vmatpush1.msra.mxu0 0.0
      %710 = vmatprep.subr.mxu0 0.0
      %711 = vmatpush1.msra.mxu0 0.0
      %712 = vmatprep.subr.mxu0 0.0
      %713 = vmatpush1.msra.mxu0 0.0
      %714 = vmatprep.subr.mxu0 0.0
      %715 = vmatpush1.msra.mxu0 0.0
      %716 = vmatprep.subr.mxu0 0.0
      %717 = vmatpush1.msra.mxu0 %v610
      %718 = vmatprep.subr.mxu0 0.0
      %719 = vmatpush1.msra.mxu0 %v609
      %720 = vmatprep.subr.mxu0 0.0
      %721 = vmatpush1.msra.mxu0 %v608
      %722 = vmatprep.subr.mxu0 0.0
      %723 = vmatpush1.msra.mxu0 %v607
      %724 = vmatprep.subr.mxu0 0.0
      %725 = vmatpush1.msra.mxu0 %v606
      %726 = vmatprep.subr.mxu0 0.0
      %727 = vmatpush1.msra.mxu0 %v605
      %728 = vmatprep.subr.mxu0 0.0
      %729 = vmatpush1.msra.mxu0 %v604
      %730 = vmatprep.subr.mxu0 0.0
      %731 = vmatpush1.msra.mxu0 %v603
      %732 = vmatprep.subr.mxu0 0.0
      %733 = vmatpush2.msra.mxu0 0.0
      %734 = vmatprep.subr.mxu0 0.0
      %735 = vmatpush2.msra.mxu0 0.0
      %736 = vmatprep.subr.mxu0 0.0
      %737 = vmatpush2.msra.mxu0 0.0
      %738 = vmatprep.subr.mxu0 0.0
      %739 = vmatpush2.msra.mxu0 0.0
      %740 = vmatprep.subr.mxu0 0.0
      %741 = vmatpush2.msra.mxu0 0.0
      %742 = vmatprep.subr.mxu0 0.0
      %743 = vmatpush2.msra.mxu0 0.0
      %744 = vmatprep.subr.mxu0 0.0
      %745 = vmatpush2.msra.mxu0 0.0
      %746 = vmatprep.subr.mxu0 0.0
      %747 = vmatpush2.msra.mxu0 0.0
      %748 = vmatprep.subr.mxu0 0.0
      %749 = vmatpush2.msra.mxu0 0.0
      %750 = vmatprep.subr.mxu0 0.0
      %751 = vmatpush2.msra.mxu0 0.0
      %752 = vmatprep.subr.mxu0 0.0
      %753 = vmatpush2.msra.mxu0 0.0
      %754 = vmatprep.subr.mxu0 0.0
      %755 = vmatpush2.msra.mxu0 0.0
      %756 = vmatprep.subr.mxu0 0.0
      %757 = vmatpush2.msra.mxu0 0.0
      %758 = vmatprep.subr.mxu0 0.0
      %759 = vmatpush2.msra.mxu0 0.0
      %760 = vmatprep.subr.mxu0 0.0
      %761 = vmatpush2.msra.mxu0 0.0
      %762 = vmatprep.subr.mxu0 0.0
      %763 = vmatpush2.msra.mxu0 0.0
      %764 = vmatprep.mubr.f32.mxu0 0.0
      %765 = vmatmul.mubr.f32.gmra.mxu0 %v698
      %v766 = vpop.f32.mrf.mxu0
      %v767 = vadd.f32 %v695, %v766
      %v768 = vpop.f32.mrf.mxu0
      %769 = vdwg.mxu0
      %v770 = vrot.slane %v601, 1
      %v772 = vsel %vm506, %v770, 0.0
      %v773 = vmul.f32 %v772, %v510
      %s774 = scalar_lea.vmem %s3, 128
      %v775 = vld [vmem:[%s774] sm:$0xff]
      %v776 = vld [vmem:[%s774 + $0x8] sm:$0xff]
      %v777 = vld [vmem:[%s774 + $0x10] sm:$0xff]
      %v778 = vld [vmem:[%s774 + $0x18] sm:$0xff]
      %v779 = vld [vmem:[%s774 + $0x20] sm:$0xff]
      %v780 = vld [vmem:[%s774 + $0x28] sm:$0xff]
      %v781 = vld [vmem:[%s774 + $0x30] sm:$0xff]
      %v782 = vld [vmem:[%s774 + $0x38] sm:$0xff]
      %v784 = vsel %vm624, %v773, 0
      %786 = vmatprep.subr.mxu0 0.0
      %787 = vmatpush1.msra.mxu0 0.0
      %788 = vmatprep.subr.mxu0 0.0
      %789 = vmatpush1.msra.mxu0 0.0
      %790 = vmatprep.subr.mxu0 0.0
      %791 = vmatpush1.msra.mxu0 0.0
      %792 = vmatprep.subr.mxu0 0.0
      %793 = vmatpush1.msra.mxu0 0.0
      %794 = vmatprep.subr.mxu0 0.0
      %795 = vmatpush1.msra.mxu0 0.0
      %796 = vmatprep.subr.mxu0 0.0
      %797 = vmatpush1.msra.mxu0 0.0
      %798 = vmatprep.subr.mxu0 0.0
      %799 = vmatpush1.msra.mxu0 0.0
      %800 = vmatprep.subr.mxu0 0.0
      %801 = vmatpush1.msra.mxu0 0.0
      %802 = vmatprep.subr.mxu0 0.0
      %803 = vmatpush1.msra.mxu0 %v782
      %804 = vmatprep.subr.mxu0 0.0
      %805 = vmatpush1.msra.mxu0 %v781
      %806 = vmatprep.subr.mxu0 0.0
      %807 = vmatpush1.msra.mxu0 %v780
      %808 = vmatprep.subr.mxu0 0.0
      %809 = vmatpush1.msra.mxu0 %v779
      %810 = vmatprep.subr.mxu0 0.0
      %811 = vmatpush1.msra.mxu0 %v778
      %812 = vmatprep.subr.mxu0 0.0
      %813 = vmatpush1.msra.mxu0 %v777
      %814 = vmatprep.subr.mxu0 0.0
      %815 = vmatpush1.msra.mxu0 %v776
      %816 = vmatprep.subr.mxu0 0.0
      %817 = vmatpush1.msra.mxu0 %v775
      %818 = vmatprep.subr.mxu0 0.0
      %819 = vmatpush2.msra.mxu0 0.0
      %820 = vmatprep.subr.mxu0 0.0
      %821 = vmatpush2.msra.mxu0 0.0
      %822 = vmatprep.subr.mxu0 0.0
      %823 = vmatpush2.msra.mxu0 0.0
      %824 = vmatprep.subr.mxu0 0.0
      %825 = vmatpush2.msra.mxu0 0.0
      %826 = vmatprep.subr.mxu0 0.0
      %827 = vmatpush2.msra.mxu0 0.0
      %828 = vmatprep.subr.mxu0 0.0
      %829 = vmatpush2.msra.mxu0 0.0
      %830 = vmatprep.subr.mxu0 0.0
      %831 = vmatpush2.msra.mxu0 0.0
      %832 = vmatprep.subr.mxu0 0.0
      %833 = vmatpush2.msra.mxu0 0.0
      %834 = vmatprep.subr.mxu0 0.0
      %835 = vmatpush2.msra.mxu0 0.0
      %836 = vmatprep.subr.mxu0 0.0
      %837 = vmatpush2.msra.mxu0 0.0
      %838 = vmatprep.subr.mxu0 0.0
      %839 = vmatpush2.msra.mxu0 0.0
      %840 = vmatprep.subr.mxu0 0.0
      %841 = vmatpush2.msra.mxu0 0.0
      %842 = vmatprep.subr.mxu0 0.0
      %843 = vmatpush2.msra.mxu0 0.0
      %844 = vmatprep.subr.mxu0 0.0
      %845 = vmatpush2.msra.mxu0 0.0
      %846 = vmatprep.subr.mxu0 0.0
      %847 = vmatpush2.msra.mxu0 0.0
      %848 = vmatprep.subr.mxu0 0.0
      %849 = vmatpush2.msra.mxu0 0.0
      %850 = vmatprep.mubr.f32.mxu0 0.0
      %851 = vmatmul.mubr.f32.gmra.mxu0 %v784
      %v852 = vpop.f32.mrf.mxu0
      %v853 = vadd.f32 0.0, %v852
      %v854 = vpop.f32.mrf.mxu0
      %855 = vdwg.mxu0
      %v856 = vadd.f32 %v767, %v853
      %p857 = scmp.eq.s32.totalorder %s23, 0
      %p858 = scmp.eq.s32.totalorder %s24, 0
      %p859 = pnand %p857, %p858
      %p860 = pneg %p859
      // Predicated region
      $region53: #{unet_innermost_forward.1} parent=51 // pred_check
        _
      $region54: #{unet_innermost_forward.1} parent=51 // pred_check_branch
        %862 = sbr.rel (%p859) target = $region56
      $region55: #{unet_innermost_forward.1} parent=51 // pred_region
        %863 = vst [vmem:[#allocation2] sm:$0x1] 0.0
        %864 = vst [vmem:[#allocation3] sm:$0x1] 0.0
      $region56: #{unet_innermost_forward.1} parent=51 // pred_fallthru
        _
      // Predicated region
      $region57: #{unet_innermost_forward.1} parent=51 // pred_check
        %p865 = pneg %p857
      $region58: #{unet_innermost_forward.1} parent=51 // pred_check_branch
        %867 = sbr.rel (%p865) target = $region60
      $region59: #{unet_innermost_forward.1} parent=51 // pred_region
        %v868 = vld [vmem:[#allocation2] sm:$0x1]
        %v869 = vrot.slane %v856, 4
        %v870 = vadd.f32 %v856, %v869
        %v871 = vrot.slane %v870, 2
        %v872 = vadd.f32 %v870, %v871
        %v873 = vrot.slane %v872, 1
        %v874 = vadd.f32 %v872, %v873
        %v875 = vadd.f32 %v868, %v874
        %876 = vst [vmem:[#allocation2] sm:$0x1] %v875
        %v877 = vld [vmem:[#allocation3] sm:$0x1]
        %v878 = vmul.f32 %v856, %v856
        %v879 = vrot.slane %v878, 4
        %v880 = vadd.f32 %v878, %v879
        %v881 = vrot.slane %v880, 2
        %v882 = vadd.f32 %v880, %v881
        %v883 = vrot.slane %v882, 1
        %v884 = vadd.f32 %v882, %v883
        %v885 = vadd.f32 %v877, %v884
        %886 = vst [vmem:[#allocation3] sm:$0x1] %v885
      $region60: #{unet_innermost_forward.1} parent=51 // pred_fallthru
        _
      %p887 = scmp.eq.s32.totalorder %s23, 1
      %p888 = pnand %p887, %p858
      %p889 = pneg %p888
      // Predicated region
      $region61: #{unet_innermost_forward.1} parent=51 // pred_check
        _
      $region62: #{unet_innermost_forward.1} parent=51 // pred_check_branch
        %891 = sbr.rel (%p888) target = $region64
      $region63: #{unet_innermost_forward.1} parent=51 // pred_region
        %v892 = vld [vmem:[#allocation2] sm:$0x1]
        %v893 = vld [vmem:[%s4] sm:$0xff]
        %v894 = vld [vmem:[%s4 + $0x8] sm:$0xff]
        %v895 = vld [vmem:[%s4 + $0x10] sm:$0xff]
        %v896 = vld [vmem:[%s4 + $0x18] sm:$0xff]
        %v897 = vld [vmem:[%s4 + $0x20] sm:$0xff]
        %v898 = vld [vmem:[%s4 + $0x28] sm:$0xff]
        %v899 = vld [vmem:[%s4 + $0x30] sm:$0xff]
        %v900 = vld [vmem:[%s4 + $0x38] sm:$0xff]
        %v901 = vld [vmem:[%s4 + $0x40] sm:$0xff]
        %v902 = vld [vmem:[%s4 + $0x48] sm:$0xff]
        %v903 = vld [vmem:[%s4 + $0x50] sm:$0xff]
        %v904 = vld [vmem:[%s4 + $0x58] sm:$0xff]
        %v905 = vld [vmem:[%s4 + $0x60] sm:$0xff]
        %v906 = vld [vmem:[%s4 + $0x68] sm:$0xff]
        %v907 = vld [vmem:[%s4 + $0x70] sm:$0xff]
        %v908 = vld [vmem:[%s4 + $0x78] sm:$0xff]
        %909 = vmatprep.subr.mxu0 0.0
        %910 = vmatpush1.msra.mxu0 %v908
        %911 = vmatprep.subr.mxu0 0.0
        %912 = vmatpush1.msra.mxu0 %v907
        %913 = vmatprep.subr.mxu0 0.0
        %914 = vmatpush1.msra.mxu0 %v906
        %915 = vmatprep.subr.mxu0 0.0
        %916 = vmatpush1.msra.mxu0 %v905
        %917 = vmatprep.subr.mxu0 0.0
        %918 = vmatpush1.msra.mxu0 %v904
        %919 = vmatprep.subr.mxu0 0.0
        %920 = vmatpush1.msra.mxu0 %v903
        %921 = vmatprep.subr.mxu0 0.0
        %922 = vmatpush1.msra.mxu0 %v902
        %923 = vmatprep.subr.mxu0 0.0
        %924 = vmatpush1.msra.mxu0 %v901
        %925 = vmatprep.subr.mxu0 0.0
        %926 = vmatpush1.msra.mxu0 %v900
        %927 = vmatprep.subr.mxu0 0.0
        %928 = vmatpush1.msra.mxu0 %v899
        %929 = vmatprep.subr.mxu0 0.0
        %930 = vmatpush1.msra.mxu0 %v898
        %931 = vmatprep.subr.mxu0 0.0
        %932 = vmatpush1.msra.mxu0 %v897
        %933 = vmatprep.subr.mxu0 0.0
        %934 = vmatpush1.msra.mxu0 %v896
        %935 = vmatprep.subr.mxu0 0.0
        %936 = vmatpush1.msra.mxu0 %v895
        %937 = vmatprep.subr.mxu0 0.0
        %938 = vmatpush1.msra.mxu0 %v894
        %939 = vmatprep.subr.mxu0 0.0
        %940 = vmatpush1.msra.mxu0 %v893
        %941 = vmatprep.subr.mxu0 0.0
        %942 = vmatpush2.msra.mxu0 0.0
        %943 = vmatprep.subr.mxu0 0.0
        %944 = vmatpush2.msra.mxu0 0.0
        %945 = vmatprep.subr.mxu0 0.0
        %946 = vmatpush2.msra.mxu0 0.0
        %947 = vmatprep.subr.mxu0 0.0
        %948 = vmatpush2.msra.mxu0 0.0
        %949 = vmatprep.subr.mxu0 0.0
        %950 = vmatpush2.msra.mxu0 0.0
        %951 = vmatprep.subr.mxu0 0.0
        %952 = vmatpush2.msra.mxu0 0.0
        %953 = vmatprep.subr.mxu0 0.0
        %954 = vmatpush2.msra.mxu0 0.0
        %955 = vmatprep.subr.mxu0 0.0
        %956 = vmatpush2.msra.mxu0 0.0
        %957 = vmatprep.subr.mxu0 0.0
        %958 = vmatpush2.msra.mxu0 0.0
        %959 = vmatprep.subr.mxu0 0.0
        %960 = vmatpush2.msra.mxu0 0.0
        %961 = vmatprep.subr.mxu0 0.0
        %962 = vmatpush2.msra.mxu0 0.0
        %963 = vmatprep.subr.mxu0 0.0
        %964 = vmatpush2.msra.mxu0 0.0
        %965 = vmatprep.subr.mxu0 0.0
        %966 = vmatpush2.msra.mxu0 0.0
        %967 = vmatprep.subr.mxu0 0.0
        %968 = vmatpush2.msra.mxu0 0.0
        %969 = vmatprep.subr.mxu0 0.0
        %970 = vmatpush2.msra.mxu0 0.0
        %971 = vmatprep.subr.mxu0 0.0
        %972 = vmatpush2.msra.mxu0 0.0
        %973 = vmatprep.mubr.f32.mxu0 0.0
        %974 = vmatmul.mubr.f32.gmra.mxu0 %v892
        %v975 = vpop.f32.mrf.mxu0
        %v976 = vadd.f32 0.0, %v975
        %v977 = vpop.f32.mrf.mxu0
        %978 = vdwg.mxu0
        %v979 = vmul.f32 %v976, 0.001953125
        %v980 = vld [vmem:[#allocation3] sm:$0x1]
        %981 = vmatprep.subr.mxu0 0.0
        %982 = vmatpush1.msra.mxu0 %v908
        %983 = vmatprep.subr.mxu0 0.0
        %984 = vmatpush1.msra.mxu0 %v907
        %985 = vmatprep.subr.mxu0 0.0
        %986 = vmatpush1.msra.mxu0 %v906
        %987 = vmatprep.subr.mxu0 0.0
        %988 = vmatpush1.msra.mxu0 %v905
        %989 = vmatprep.subr.mxu0 0.0
        %990 = vmatpush1.msra.mxu0 %v904
        %991 = vmatprep.subr.mxu0 0.0
        %992 = vmatpush1.msra.mxu0 %v903
        %993 = vmatprep.subr.mxu0 0.0
        %994 = vmatpush1.msra.mxu0 %v902
        %995 = vmatprep.subr.mxu0 0.0
        %996 = vmatpush1.msra.mxu0 %v901
        %997 = vmatprep.subr.mxu0 0.0
        %998 = vmatpush1.msra.mxu0 %v900
        %999 = vmatprep.subr.mxu0 0.0
        %1000 = vmatpush1.msra.mxu0 %v899
        %1001 = vmatprep.subr.mxu0 0.0
        %1002 = vmatpush1.msra.mxu0 %v898
        %1003 = vmatprep.subr.mxu0 0.0
        %1004 = vmatpush1.msra.mxu0 %v897
        %1005 = vmatprep.subr.mxu0 0.0
        %1006 = vmatpush1.msra.mxu0 %v896
        %1007 = vmatprep.subr.mxu0 0.0
        %1008 = vmatpush1.msra.mxu0 %v895
        %1009 = vmatprep.subr.mxu0 0.0
        %1010 = vmatpush1.msra.mxu0 %v894
        %1011 = vmatprep.subr.mxu0 0.0
        %1012 = vmatpush1.msra.mxu0 %v893
        %1013 = vmatprep.subr.mxu0 0.0
        %1014 = vmatpush2.msra.mxu0 0.0
        %1015 = vmatprep.subr.mxu0 0.0
        %1016 = vmatpush2.msra.mxu0 0.0
        %1017 = vmatprep.subr.mxu0 0.0
        %1018 = vmatpush2.msra.mxu0 0.0
        %1019 = vmatprep.subr.mxu0 0.0
        %1020 = vmatpush2.msra.mxu0 0.0
        %1021 = vmatprep.subr.mxu0 0.0
        %1022 = vmatpush2.msra.mxu0 0.0
        %1023 = vmatprep.subr.mxu0 0.0
        %1024 = vmatpush2.msra.mxu0 0.0
        %1025 = vmatprep.subr.mxu0 0.0
        %1026 = vmatpush2.msra.mxu0 0.0
        %1027 = vmatprep.subr.mxu0 0.0
        %1028 = vmatpush2.msra.mxu0 0.0
        %1029 = vmatprep.subr.mxu0 0.0
        %1030 = vmatpush2.msra.mxu0 0.0
        %1031 = vmatprep.subr.mxu0 0.0
        %1032 = vmatpush2.msra.mxu0 0.0
        %1033 = vmatprep.subr.mxu0 0.0
        %1034 = vmatpush2.msra.mxu0 0.0
        %1035 = vmatprep.subr.mxu0 0.0
        %1036 = vmatpush2.msra.mxu0 0.0
        %1037 = vmatprep.subr.mxu0 0.0
        %1038 = vmatpush2.msra.mxu0 0.0
        %1039 = vmatprep.subr.mxu0 0.0
        %1040 = vmatpush2.msra.mxu0 0.0
        %1041 = vmatprep.subr.mxu0 0.0
        %1042 = vmatpush2.msra.mxu0 0.0
        %1043 = vmatprep.subr.mxu0 0.0
        %1044 = vmatpush2.msra.mxu0 0.0
        %1045 = vmatprep.mubr.f32.mxu0 0.0
        %1046 = vmatmul.mubr.f32.gmra.mxu0 %v980
        %v1047 = vpop.f32.mrf.mxu0
        %v1048 = vadd.f32 0.0, %v1047
        %v1049 = vpop.f32.mrf.mxu0
        %1050 = vdwg.mxu0
        %v1051 = vmul.f32 %v1048, 0.001953125
        %v1052 = vmul.f32 %v979, %v979
        %v1053 = vsub.f32 %v1051, %v1052
        %v1054 = vld [vmem:[%s6] sm:$0x1]
        %v1055 = vadd.f32 %v1053, 1e-05
        %v1056 = vrsqrt.pop %v1055
        %v1057 = vmul.f32 %v1054, %v1056
        %v1058 = vld [vmem:[%s7] sm:$0x1]
        %v1059 = vmul.f32 %v979, %v1057
        %v1060 = vsub.f32 %v1058, %v1059
        %v1061 = vld [vmem:[%s5] sm:$0xf]
        %vm1062 = vcmask 31744
        %v1064 = vsel %vm1062, %v1057, 0
        %vm1066 = vcmask 1043456
        %v1068 = vsel %vm1066, %v1061, 0
        %1070 = vmatprep.subr.mxu0 0.0
        %1071 = vmatpush1.msra.mxu0 0.0
        %1072 = vmatprep.subr.mxu0 0.0
        %1073 = vmatpush1.msra.mxu0 0.0
        %1074 = vmatprep.subr.mxu0 0.0
        %1075 = vmatpush1.msra.mxu0 0.0
        %1076 = vmatprep.subr.mxu0 0.0
        %1077 = vmatpush1.msra.mxu0 0.0
        %1078 = vmatprep.subr.mxu0 0.0
        %1079 = vmatpush1.msra.mxu0 0.0
        %1080 = vmatprep.subr.mxu0 0.0
        %1081 = vmatpush1.msra.mxu0 0.0
        %1082 = vmatprep.subr.mxu0 0.0
        %1083 = vmatpush1.msra.mxu0 0.0
        %1084 = vmatprep.subr.mxu0 0.0
        %1085 = vmatpush1.msra.mxu0 0.0
        %1086 = vmatprep.subr.mxu0 0.0
        %1087 = vmatpush1.msra.mxu0 0.0
        %1088 = vmatprep.subr.mxu0 0.0
        %1089 = vmatpush1.msra.mxu0 0.0
        %1090 = vmatprep.subr.mxu0 0.0
        %1091 = vmatpush1.msra.mxu0 0.0
        %1092 = vmatprep.subr.mxu0 0.0
        %1093 = vmatpush1.msra.mxu0 0.0
        %1094 = vmatprep.subr.mxu0 0.0
        %1095 = vmatpush1.msra.mxu0 0.0
        %1096 = vmatprep.subr.mxu0 0.0
        %1097 = vmatpush1.msra.mxu0 0.0
        %1098 = vmatprep.subr.mxu0 0.0
        %1099 = vmatpush1.msra.mxu0 0.0
        %1100 = vmatprep.subr.mxu0 0.0
        %1101 = vmatpush1.msra.mxu0 %v1068
        %1102 = vmatprep.subr.mxu0 0.0
        %1103 = vmatpush2.msra.mxu0 0.0
        %1104 = vmatprep.subr.mxu0 0.0
        %1105 = vmatpush2.msra.mxu0 0.0
        %1106 = vmatprep.subr.mxu0 0.0
        %1107 = vmatpush2.msra.mxu0 0.0
        %1108 = vmatprep.subr.mxu0 0.0
        %1109 = vmatpush2.msra.mxu0 0.0
        %1110 = vmatprep.subr.mxu0 0.0
        %1111 = vmatpush2.msra.mxu0 0.0
        %1112 = vmatprep.subr.mxu0 0.0
        %1113 = vmatpush2.msra.mxu0 0.0
        %1114 = vmatprep.subr.mxu0 0.0
        %1115 = vmatpush2.msra.mxu0 0.0
        %1116 = vmatprep.subr.mxu0 0.0
        %1117 = vmatpush2.msra.mxu0 0.0
        %1118 = vmatprep.subr.mxu0 0.0
        %1119 = vmatpush2.msra.mxu0 0.0
        %1120 = vmatprep.subr.mxu0 0.0
        %1121 = vmatpush2.msra.mxu0 0.0
        %1122 = vmatprep.subr.mxu0 0.0
        %1123 = vmatpush2.msra.mxu0 0.0
        %1124 = vmatprep.subr.mxu0 0.0
        %1125 = vmatpush2.msra.mxu0 0.0
        %1126 = vmatprep.subr.mxu0 0.0
        %1127 = vmatpush2.msra.mxu0 0.0
        %1128 = vmatprep.subr.mxu0 0.0
        %1129 = vmatpush2.msra.mxu0 0.0
        %1130 = vmatprep.subr.mxu0 0.0
        %1131 = vmatpush2.msra.mxu0 0.0
        %1132 = vmatprep.subr.mxu0 0.0
        %1133 = vmatpush2.msra.mxu0 0.0
        %1134 = vmatprep.mubr.f32.mxu0 0.0
        %1135 = vmatmul.mubr.f32.gmra.mxu0 %v1064
        %v1136 = vpop.f32.mrf.mxu0
        %v1137 = vadd.f32 0.0, %v1136
        %v1138 = vpop.f32.mrf.mxu0
        %1139 = vdwg.mxu0
        %1140 = vst [vmem:[#allocation4] sm:$0x1] %v1137
        %v1141 = vld [vmem:[%s5] sm:$0xf]
        %v1143 = vsel %vm1062, %v1060, 0
        %v1146 = vsel %vm1066, %v1141, 0
        %1148 = vmatprep.subr.mxu0 0.0
        %1149 = vmatpush1.msra.mxu0 0.0
        %1150 = vmatprep.subr.mxu0 0.0
        %1151 = vmatpush1.msra.mxu0 0.0
        %1152 = vmatprep.subr.mxu0 0.0
        %1153 = vmatpush1.msra.mxu0 0.0
        %1154 = vmatprep.subr.mxu0 0.0
        %1155 = vmatpush1.msra.mxu0 0.0
        %1156 = vmatprep.subr.mxu0 0.0
        %1157 = vmatpush1.msra.mxu0 0.0
        %1158 = vmatprep.subr.mxu0 0.0
        %1159 = vmatpush1.msra.mxu0 0.0
        %1160 = vmatprep.subr.mxu0 0.0
        %1161 = vmatpush1.msra.mxu0 0.0
        %1162 = vmatprep.subr.mxu0 0.0
        %1163 = vmatpush1.msra.mxu0 0.0
        %1164 = vmatprep.subr.mxu0 0.0
        %1165 = vmatpush1.msra.mxu0 0.0
        %1166 = vmatprep.subr.mxu0 0.0
        %1167 = vmatpush1.msra.mxu0 0.0
        %1168 = vmatprep.subr.mxu0 0.0
        %1169 = vmatpush1.msra.mxu0 0.0
        %1170 = vmatprep.subr.mxu0 0.0
        %1171 = vmatpush1.msra.mxu0 0.0
        %1172 = vmatprep.subr.mxu0 0.0
        %1173 = vmatpush1.msra.mxu0 0.0
        %1174 = vmatprep.subr.mxu0 0.0
        %1175 = vmatpush1.msra.mxu0 0.0
        %1176 = vmatprep.subr.mxu0 0.0
        %1177 = vmatpush1.msra.mxu0 0.0
        %1178 = vmatprep.subr.mxu0 0.0
        %1179 = vmatpush1.msra.mxu0 %v1146
        %1180 = vmatprep.subr.mxu0 0.0
        %1181 = vmatpush2.msra.mxu0 0.0
        %1182 = vmatprep.subr.mxu0 0.0
        %1183 = vmatpush2.msra.mxu0 0.0
        %1184 = vmatprep.subr.mxu0 0.0
        %1185 = vmatpush2.msra.mxu0 0.0
        %1186 = vmatprep.subr.mxu0 0.0
        %1187 = vmatpush2.msra.mxu0 0.0
        %1188 = vmatprep.subr.mxu0 0.0
        %1189 = vmatpush2.msra.mxu0 0.0
        %1190 = vmatprep.subr.mxu0 0.0
        %1191 = vmatpush2.msra.mxu0 0.0
        %1192 = vmatprep.subr.mxu0 0.0
        %1193 = vmatpush2.msra.mxu0 0.0
        %1194 = vmatprep.subr.mxu0 0.0
        %1195 = vmatpush2.msra.mxu0 0.0
        %1196 = vmatprep.subr.mxu0 0.0
        %1197 = vmatpush2.msra.mxu0 0.0
        %1198 = vmatprep.subr.mxu0 0.0
        %1199 = vmatpush2.msra.mxu0 0.0
        %1200 = vmatprep.subr.mxu0 0.0
        %1201 = vmatpush2.msra.mxu0 0.0
        %1202 = vmatprep.subr.mxu0 0.0
        %1203 = vmatpush2.msra.mxu0 0.0
        %1204 = vmatprep.subr.mxu0 0.0
        %1205 = vmatpush2.msra.mxu0 0.0
        %1206 = vmatprep.subr.mxu0 0.0
        %1207 = vmatpush2.msra.mxu0 0.0
        %1208 = vmatprep.subr.mxu0 0.0
        %1209 = vmatpush2.msra.mxu0 0.0
        %1210 = vmatprep.subr.mxu0 0.0
        %1211 = vmatpush2.msra.mxu0 0.0
        %1212 = vmatprep.mubr.f32.mxu0 0.0
        %1213 = vmatmul.mubr.f32.gmra.mxu0 %v1143
        %v1214 = vpop.f32.mrf.mxu0
        %v1215 = vadd.f32 0.0, %v1214
        %v1216 = vpop.f32.mrf.mxu0
        %1217 = vdwg.mxu0
        %1218 = vst [vmem:[#allocation5] sm:$0x1] %v1215
      $region64: #{unet_innermost_forward.1} parent=51 // pred_fallthru
        _
      // Predicated region
      $region65: #{unet_innermost_forward.1} parent=51 // pred_check
        %p1219 = pneg %p887
      $region66: #{unet_innermost_forward.1} parent=51 // pred_check_branch
        %1221 = sbr.rel (%p1219) target = $region68
      $region67: #{unet_innermost_forward.1} parent=51 // pred_region
        %v1222 = vld [vmem:[#allocation4] sm:$0x1]
        %v1224 = vlaneseq
        %v1225 = vshrl.u32 %v1224, 7
        %v1226 = vsub.s32 0, %v1225
        %v1227 = vrot.slane %v1222, %v1226
        %v1229 = vmul.f32 %v856, %v1227
        %v1230 = vld [vmem:[#allocation5] sm:$0x1]
        %v1232 = vlaneseq
        %v1233 = vshrl.u32 %v1232, 7
        %v1234 = vsub.s32 0, %v1233
        %v1235 = vrot.slane %v1230, %v1234
        %v1237 = vadd.f32 %v1229, %v1235
        %1238 = vst [vmem:[%s314] sm:$0xff] %v319
        %1239 = vst [vmem:[%s314 + $0x8] sm:$0xff] %v1237
      $region68: #{unet_innermost_forward.1} parent=51 // pred_fallthru
        _
      %p1240 = scmp.lt.s32.totalorder %s24, 1
      %s1241 = scalar_select %p1240, %s24, 1
      %s1242 = smul.addr %s1241, 2
      %s1243 = smul.addr %s1242, 8
      %s1244 = scalar_lea.vmem %s8, %s1243
      // Predicated region
      $region69: #{unet_innermost_forward.1} parent=51 // pred_check
        %p1245 = pneg %p222
      $region70: #{unet_innermost_forward.1} parent=51 // pred_check_branch
        %1247 = sbr.rel (%p1245) target = $region72
      $region71: #{unet_innermost_forward.1} parent=51 // pred_region
        _
      $region72: #{unet_innermost_forward.1} parent=51 // pred_fallthru
        _
    $region52: #{unet_innermost_forward.1} parent=5 // pred_fallthru
      _
    %p1248 = scmp.le.s32.totalorder 2, %s14
    // Predicated region
    $region73: #{unet_innermost_forward.1} parent=5 // pred_check
      %p1249 = pneg %p1248
    $region74: #{unet_innermost_forward.1} parent=5 // pred_check_branch
      %1251 = sbr.rel (%p1249) target = $region76
    $region75: #{unet_innermost_forward.1} parent=5 // pred_region
      %s1252 = ssub.s32 %s14, 2
      // Predicated region
      $region77: #{unet_innermost_forward.1} parent=75 // pred_check
        %p1253 = pneg %p228
      $region78: #{unet_innermost_forward.1} parent=75 // pred_check_branch
        %1255 = sbr.rel (%p1253) target = $region80
      $region79: #{unet_innermost_forward.1} parent=75 // pred_region
        %p1256 = scmp.lt.s32.totalorder %s26, 1
        %s1257 = scalar_select %p1256, %s26, 1
        %s1258 = smul.addr %s1257, 2
        %s1259 = smul.addr %s1258, 8
        %s1260 = scalar_lea.vmem %s8, %s1259
      $region80: #{unet_innermost_forward.1} parent=75 // pred_fallthru
        _
    $region76: #{unet_innermost_forward.1} parent=5 // pred_fallthru
      _
  $region6: #{unet_innermost_forward.1} parent=0 // loop_footer
    %s18 = sadd.s32 1, %s14
  $region7: #{unet_innermost_forward.1} parent=0 // loop_footer_branch
    %13 = sbr.rel target = $region3
  $region8: #{unet_innermost_forward.1} parent=0 // loop_exit
    _

</llo_original>
